<compile_context>
chip_gen: v7x
topology: tpu7x:2x2x1
jax: 0.10.0
libtpu: 0.0.40
codegen_flags: <defaults>
</compile_context>

<pallas_src>
import math

import jax
import jax.numpy as jnp
import numpy as np
from jax import lax
from jax.experimental import pallas as pl
from jax.experimental.pallas import tpu as pltpu

# ------------------------- model sizes (small test) -------------------------
B = 4           # images fused into one launch (grid axis, "parallel")
N = 16          # proposals per image
D = 32          # input_size == d_model (even: linear1/2 go to D//2)
C = 20          # number of foreground classes; +1 background
TEXT_DIM = 300  # GloVe dim (hardcoded in module)
D_FFN = 1024    # hardcoded in FFN
C_PAD = 32      # class table rows padded to 32 (clean one-hot K dim)
H = D // 2


# --------------------------------- kernel -----------------------------------
def _lv_attention_vkv_kernel(
    lab_ref,      # (N, 1)  int32     per-image labels
    vis_ref,      # (N, D)  f32       per-image visual features
    wsq_ref,      # (D, 9D) bf16      packed matmul weights + class table
    vec_ref,      # (8, D)  f32       packed biases / dummy / LayerNorm params
    ffn_ref,      # (2D, D_FFN) bf16  rows [0:D]=wf1, rows [D:2D]=wf2^T
    bf1_ref,      # (1, D_FFN)  f32   FFN bias 1
    txt_out_ref,  # (N, D)  f32
    out_ref,      # (N, D)  f32
):
  f32, bf16 = jnp.float32, jnp.bfloat16
  n, d = vis_ref.shape
  h = d // 2

  # ---- unpack the f32 vector slab (elementwise math stays f32) ----
  bpk   = vec_ref[0:1, :]
  dummy = vec_ref[1:2, :]
  b12   = vec_ref[2:3, :]          # [b1 | b2]
  b3    = vec_ref[3:4, :]
  bf2   = vec_ref[4:5, :]
  ln_g  = vec_ref[5:6, :]
  ln_b  = vec_ref[6:7, :]

  # ---- unpack the bf16 weight slab with static column views ----
  wpk_v = wsq_ref[:, 0 * d:1 * d]
  wpk_t = wsq_ref[:, 1 * d:2 * d]
  wq    = wsq_ref[:, 2 * d:3 * d]
  wk    = wsq_ref[:, 3 * d:4 * d]
  wv    = wsq_ref[:, 4 * d:5 * d]
  w3r   = wsq_ref[:, 5 * d:6 * d]
  w3ab  = wsq_ref[:, 6 * d:7 * d]          # rows [0:h]=w3a, rows [h:d]=w3b
  w1    = wsq_ref[:, 7 * d:7 * d + h]
  w2    = wsq_ref[:, 7 * d + h:8 * d]
  table = wsq_ref[:, 8 * d:9 * d]          # (C_PAD, d) class-embedding table

  # ---- fused label gather: bf16 one_hot(labels) @ table (K padded to 32) ----
  lab = lab_ref[...]                                              # (N, 1) i32
  onehot = (lax.broadcasted_iota(jnp.int32, (n, d), 1) == lab)
  onehot = onehot.astype(f32).astype(bf16)
  txt = jnp.dot(onehot, table, preferred_element_type=f32)        # (N, D)
  txt_out_ref[...] = txt

  vis = vis_ref[...]
  vis_b, txt_b = vis.astype(bf16), txt.astype(bf16)

  # value_feat = proj_k(cat([visual, text], -1)) with pre-split weights.
  val = (jnp.dot(vis_b, wpk_v, preferred_element_type=f32)
         + jnp.dot(txt_b, wpk_t, preferred_element_type=f32) + bpk)
  txt_r = jnp.maximum(txt, 0.0)            # ReLU(text_feat)   -> k
  val_r = jnp.maximum(val, 0.0)            # ReLU(value_feat)  -> q and v
  residual = val_r
  val_rb, txt_rb = val_r.astype(bf16), txt_r.astype(bf16)

  # --- SingleHeadSiameseAttention -------------------------------------------
  inv_temp = 1.0 / math.sqrt(d)            # fold 1/sqrt(d) into q once
  q = jnp.dot(val_rb, wq, preferred_element_type=f32) * inv_temp
  k = jnp.dot(txt_rb, wk, preferred_element_type=f32)
  v = jnp.dot(val_rb, wv, preferred_element_type=f32)

  s_main = lax.dot_general(q.astype(bf16), k.astype(bf16),
                           (((1,), (1,)), ((), ())),
                           preferred_element_type=f32)            # (N, N)
  # dummy key: its value row is all zeros -> only affects the denominator.
  s_dummy = jnp.sum(q * dummy, axis=-1, keepdims=True)            # (N, 1) VPU
  m = jnp.maximum(jnp.max(s_main, axis=-1, keepdims=True), s_dummy)
  e_main = jnp.exp(s_main - m)
  e_dummy = jnp.exp(s_dummy - m)
  denom = jnp.sum(e_main, axis=-1, keepdims=True) + e_dummy
  attn_out = (jnp.dot(e_main.astype(bf16), v.astype(bf16),
                      preferred_element_type=f32)
              * pl.reciprocal(denom, approx=True))                # (N, D)

  # gated combination + linear3 (concat expressed via packed weights)
  out1 = jnp.maximum(
      jnp.dot((attn_out * residual).astype(bf16), w1,
              preferred_element_type=f32) + b12[:, :h], 0.0)      # (N, D/2)
  out2 = jnp.maximum(
      jnp.dot((residual - attn_out).astype(bf16), w2,
              preferred_element_type=f32) + b12[:, h:], 0.0)      # (N, D/2)
  out12 = jnp.concatenate([out1, out2], axis=-1).astype(bf16)     # (N, D)
  lin3 = (jnp.dot(out12, w3ab, preferred_element_type=f32)
          + jnp.dot(val_rb, w3r, preferred_element_type=f32) + b3)

  # --- FFN: linear(1024) -> relu -> linear(D), residual, LayerNorm ----------
  wf1 = ffn_ref[0:d, :]                     # (D, D_FFN) bf16
  wf2t = ffn_ref[d:2 * d, :]                # (D, D_FFN) bf16 (lane-dense wf2^T)
  ff = jnp.maximum(
      jnp.dot(lin3.astype(bf16), wf1, preferred_element_type=f32)
      + bf1_ref[...], 0.0)                                        # (N, D_FFN)
  tgt2 = lax.dot_general(ff.astype(bf16), wf2t,
                         (((1,), (1,)), ((), ())),
                         preferred_element_type=f32) + bf2
  tgt = lin3 + tgt2                                               # (N, D)
  mean = jnp.mean(tgt, axis=-1, keepdims=True)
  var = jnp.mean((tgt - mean) ** 2, axis=-1, keepdims=True)
  normed = (tgt - mean) * lax.rsqrt(var + 1e-5)
  out = normed * ln_g + ln_b

  # sim2stext = relu(attention output)
  out_ref[...] = jnp.maximum(out, 0.0)


# ------------------------------ param plumbing -------------------------------
def prepare_kernel_params(raw):
  """One-time (init) preprocessing: precompute the class-embedding table,
  pre-split concat-weights, pack everything into lane-dense slabs, bf16-cast
  the matmul weights."""
  f32, bf16 = jnp.float32, jnp.bfloat16
  d = raw["wq"].shape[0]
  h = d // 2
  assert C_PAD == d, "class table rows are padded to the slab's row extent"

  # Language-model glue computed ONCE at init (params only).
  embed_all = jnp.concatenate([raw["embed"], raw["w_bg"]], axis=0)   # (C+1, 300)
  table = (jnp.dot(embed_all, raw["proj2_w"],
                   precision=lax.Precision.HIGHEST)
           + raw["proj2_b"]).astype(f32)                             # (C+1, D)
  table = jnp.pad(table, ((0, C_PAD - table.shape[0]), (0, 0)))      # (32, D)

  w3 = raw["w3"]
  wsq = jnp.concatenate(
      [raw["proj_k_w"][:d],          # wpk_v
       raw["proj_k_w"][d:],          # wpk_t
       raw["wq"], raw["wk"], raw["wv"],
       w3[d:],                       # w3r  (residual branch of linear3)
       w3[:d],                       # w3ab ([w3a; w3b] for [out1|out2])
       raw["w1"], raw["w2"],         # (D, D/2) each
       table],
      axis=1).astype(bf16)                                           # (D, 9D)

  vec = jnp.zeros((8, d), f32)
  vec = vec.at[0].set(raw["proj_k_b"].reshape(-1))
  vec = vec.at[1].set(raw["dummy"].reshape(-1))
  vec = vec.at[2, :h].set(raw["b1"].reshape(-1))
  vec = vec.at[2, h:].set(raw["b2"].reshape(-1))
  vec = vec.at[3].set(raw["b3"].reshape(-1))
  vec = vec.at[4].set(raw["bf2"].reshape(-1))
  vec = vec.at[5].set(raw["ln_g"].reshape(-1))
  vec = vec.at[6].set(raw["ln_b"].reshape(-1))

  # wf2 stored transposed -> lane-dense (D, D_FFN); wf1 already lane-dense.
  ffn = jnp.concatenate([raw["wf1"], raw["wf2"].T], axis=0).astype(bf16)

  return {"wsq": wsq, "vec": vec, "ffn": ffn,
          "bf1": raw["bf1"].reshape(1, -1).astype(f32)}


# -------------------------------- wrapper ------------------------------------
@jax.jit
def lv_attention_vkv_forward(visual_feat, labels, kp):
  """visual_feat: (B, N, D) f32; labels: (B, N) int32 in [0, C]; kp: packed params.

  The B axis fuses repeated per-image module calls into one pallas_call so the
  weight slabs are DMA'd once and stay VMEM-resident; it is marked "parallel"
  so v7x can shard images across its two TensorCores."""
  b, n, d = visual_feat.shape
  lab = labels.reshape(b, n, 1).astype(jnp.int32)

  def per_image(shape):
    return pl.BlockSpec((None,) + shape, lambda i: (i,) + (0,) * len(shape))

  def resident(arr):
    nd = arr.ndim
    return pl.BlockSpec(arr.shape, lambda i, _nd=nd: (0,) * _nd)

  flops = b * (4 * n * d * D_FFN + 16 * n * d * d + 2 * n * n * d)
  transcendentals = b * n * (n + 3)
  bytes_accessed = (kp["wsq"].size * 2 + kp["vec"].size * 4
                    + kp["ffn"].size * 2 + kp["bf1"].size * 4
                    + b * (3 * n * d * 4 + n * 4))

  text_feat, sim2stext = pl.pallas_call(
      _lv_attention_vkv_kernel,
      grid=(b,),
      in_specs=[per_image((n, 1)),              # labels   (per image)
                per_image((n, d)),              # visual   (per image)
                resident(kp["wsq"]),            # weight slab (VMEM-resident)
                resident(kp["vec"]),            # bias slab
                resident(kp["ffn"]),            # FFN slab
                resident(kp["bf1"])],           # FFN bias 1
      out_specs=(per_image((n, d)), per_image((n, d))),
      out_shape=(jax.ShapeDtypeStruct((b, n, d), jnp.float32),
                 jax.ShapeDtypeStruct((b, n, d), jnp.float32)),
      compiler_params=pltpu.CompilerParams(
          dimension_semantics=("parallel",)),
      cost_estimate=pl.CostEstimate(flops=int(flops),
                                    transcendentals=int(transcendentals),
                                    bytes_accessed=int(bytes_accessed)),
  )(lab, visual_feat, kp["wsq"], kp["vec"], kp["ffn"], kp["bf1"])
  return text_feat, sim2stext


# -------------------------- pure-JAX reference (f32) -------------------------
def _reference_one(visual_feat, labels, params):
  hp = lax.Precision.HIGHEST
  def dot(a, b):
    return jnp.dot(a, b, precision=hp)
  embed_all = jnp.concatenate([params["embed"], params["w_bg"]], axis=0)
  embed_proj = dot(embed_all, params["proj2_w"]) + params["proj2_b"]
  txt = jnp.take(embed_proj, labels, axis=0)

  val = dot(jnp.concatenate([visual_feat, txt], axis=-1), params["proj_k_w"]) \
      + params["proj_k_b"]
  txt_r = jax.nn.relu(txt)
  val_r = jax.nn.relu(val)
  residual = val_r

  q = dot(val_r, params["wq"])
  k = jnp.concatenate([dot(txt_r, params["wk"]), params["dummy"]], axis=0)
  v = jnp.concatenate([dot(val_r, params["wv"]),
                       jnp.zeros((1, val_r.shape[1]), jnp.float32)], axis=0)
  attn = dot(q, k.T) / jnp.sqrt(jnp.float32(q.shape[1]))
  attn = jax.nn.softmax(attn, axis=-1)
  out = dot(attn, v)

  out1 = jax.nn.relu(dot(out * residual, params["w1"]) + params["b1"])
  out2 = jax.nn.relu(dot(residual - out, params["w2"]) + params["b2"])
  lin3 = dot(jnp.concatenate([out1, out2, residual], axis=-1), params["w3"]) \
      + params["b3"]
  ff = jax.nn.relu(dot(lin3, params["wf1"]) + params["bf1"])
  tgt = lin3 + dot(ff, params["wf2"]) + params["bf2"]
  mean = jnp.mean(tgt, axis=-1, keepdims=True)
  var = jnp.mean((tgt - mean) ** 2, axis=-1, keepdims=True)
  normed = (tgt - mean) * lax.rsqrt(var + 1e-5)
  return txt, jax.nn.relu(normed * params["ln_g"] + params["ln_b"])


# --------------------------------- main --------------------------------------
def _make_params(key):
  ks = jax.random.split(key, 16)
  std = 0.02  # init_scale used by _init_parameters
  f = jnp.float32
  return {
      # language model (GloVe replaced by deterministic random vectors)
      "embed":   jax.random.normal(ks[0], (C, TEXT_DIM), f),
      "w_bg":    jax.random.normal(ks[1], (1, TEXT_DIM), f),
      "proj2_w": jax.random.normal(ks[2], (TEXT_DIM, D), f) * std,
      "proj2_b": jnp.zeros((D,), f),
      # proj_k
      "proj_k_w": jax.random.normal(ks[3], (2 * D, D), f) * std,
      "proj_k_b": jnp.zeros((1, D), f),
      # siamese attention
      "wq": jax.random.normal(ks[4], (D, D), f) * std,
      "wk": jax.random.normal(ks[5], (D, D), f) * std,
      "wv": jax.random.normal(ks[6], (D, D), f) * std,
      "dummy": jax.random.normal(ks[7], (1, D), f),
      "w1": jax.random.normal(ks[8], (D, D // 2), f) * std,
      "b1": jnp.zeros((1, D // 2), f),
      "w2": jax.random.normal(ks[9], (D, D // 2), f) * std,
      "b2": jnp.zeros((1, D // 2), f),
      "w3": jax.random.normal(ks[10], (2 * D, D), f) * std,
      "b3": jnp.zeros((1, D), f),
      # FFN (module dtype f32; bf16 cast happens in prepare_kernel_params)
      "wf1": jax.random.normal(ks[11], (D, D_FFN), f) * std,
      "bf1": jnp.zeros((1, D_FFN), f),
      "wf2": jax.random.normal(ks[12], (D_FFN, D), f) * std,
      "bf2": jnp.zeros((1, D), f),
      # LayerNorm
      "ln_g": jnp.ones((1, D), f),
      "ln_b": jnp.zeros((1, D), f),
  }


if __name__ == "__main__":
  key = jax.random.PRNGKey(0)
  k_par, k_vis, k_lab = jax.random.split(key, 3)
  params = _make_params(k_par)
  kparams = prepare_kernel_params(params)     # one-time init-path work
  visual_feat = jax.random.normal(k_vis, (B, N, D), jnp.float32)
  labels = jax.random.randint(k_lab, (B, N), 0, C + 1, dtype=jnp.int32)

  text_feat, sim2stext = lv_attention_vkv_forward(visual_feat, labels, kparams)
  sim2stext = jax.block_until_ready(sim2stext)

  ref_txt, ref_out = jax.vmap(
      lambda v, l: _reference_one(v, l, params))(visual_feat, labels)
  np.testing.assert_allclose(np.asarray(text_feat), np.asarray(ref_txt),
                             rtol=2e-2, atol=2e-2)
  np.testing.assert_allclose(np.asarray(sim2stext), np.asarray(ref_out),
                             rtol=2e-2, atol=2e-2)
  print("KERNEL_OK")
</pallas_src>

<mosaic_0001>
module attributes {stable_mosaic.version = 11 : i64} {
  func.func @_lv_attention_vkv_kernel(%arg0: i32, %arg1: memref<1x16x1xi32, #tpu.memory_space<vmem>>, %arg2: memref<1x16x32xf32, #tpu.memory_space<vmem>>, %arg3: memref<32x288xbf16, #tpu.memory_space<vmem>>, %arg4: memref<8x32xf32, #tpu.memory_space<vmem>>, %arg5: memref<64x1024xbf16, #tpu.memory_space<vmem>>, %arg6: memref<1x1024xf32, #tpu.memory_space<vmem>>, %arg7: memref<1x16x32xf32, #tpu.memory_space<vmem>>, %arg8: memref<1x16x32xf32, #tpu.memory_space<vmem>>) attributes {dimension_semantics = [#tpu.dimension_semantics<parallel>], iteration_bounds = array<i64: 4>, scalar_prefetch = 0 : i64, scratch_operands = 0 : i64, tpu.core_type = #tpu.core_type<tc>, window_params = [{transform_indices = @transform_0, window_bounds = array<i64: 1, 16, 1>}, {transform_indices = @transform_1, window_bounds = array<i64: 1, 16, 32>}, {pipeline_mode = #tpu.pipeline_mode<synchronous>, transform_indices = @transform_2, window_bounds = array<i64: 32, 288>}, {pipeline_mode = #tpu.pipeline_mode<synchronous>, transform_indices = @transform_3, window_bounds = array<i64: 8, 32>}, {pipeline_mode = #tpu.pipeline_mode<synchronous>, transform_indices = @transform_4, window_bounds = array<i64: 64, 1024>}, {pipeline_mode = #tpu.pipeline_mode<synchronous>, transform_indices = @transform_5, window_bounds = array<i64: 1, 1024>}, {transform_indices = @transform_6, window_bounds = array<i64: 1, 16, 32>}, {transform_indices = @transform_7, window_bounds = array<i64: 1, 16, 32>}]} {
    %c0 = arith.constant 0 : index
    %c0_0 = arith.constant 0 : index
    %0 = vector.load %arg4[%c0, %c0_0] : memref<8x32xf32, #tpu.memory_space<vmem>>, vector<1x32xf32>
    %c1 = arith.constant 1 : index
    %c0_1 = arith.constant 0 : index
    %1 = vector.load %arg4[%c1, %c0_1] : memref<8x32xf32, #tpu.memory_space<vmem>>, vector<1x32xf32>
    %c2 = arith.constant 2 : index
    %c0_2 = arith.constant 0 : index
    %2 = vector.load %arg4[%c2, %c0_2] : memref<8x32xf32, #tpu.memory_space<vmem>>, vector<1x32xf32>
    %c3 = arith.constant 3 : index
    %c0_3 = arith.constant 0 : index
    %3 = vector.load %arg4[%c3, %c0_3] : memref<8x32xf32, #tpu.memory_space<vmem>>, vector<1x32xf32>
    %c4 = arith.constant 4 : index
    %c0_4 = arith.constant 0 : index
    %4 = vector.load %arg4[%c4, %c0_4] : memref<8x32xf32, #tpu.memory_space<vmem>>, vector<1x32xf32>
    %c5 = arith.constant 5 : index
    %c0_5 = arith.constant 0 : index
    %5 = vector.load %arg4[%c5, %c0_5] : memref<8x32xf32, #tpu.memory_space<vmem>>, vector<1x32xf32>
    %c6 = arith.constant 6 : index
    %c0_6 = arith.constant 0 : index
    %6 = vector.load %arg4[%c6, %c0_6] : memref<8x32xf32, #tpu.memory_space<vmem>>, vector<1x32xf32>
    %c0_7 = arith.constant 0 : index
    %c0_8 = arith.constant 0 : index
    %7 = vector.load %arg3[%c0_7, %c0_8] : memref<32x288xbf16, #tpu.memory_space<vmem>>, vector<32x32xbf16>
    %c0_9 = arith.constant 0 : index
    %c32 = arith.constant 32 : index
    %8 = vector.load %arg3[%c0_9, %c32] : memref<32x288xbf16, #tpu.memory_space<vmem>>, vector<32x32xbf16>
    %c0_10 = arith.constant 0 : index
    %c64 = arith.constant 64 : index
    %9 = vector.load %arg3[%c0_10, %c64] : memref<32x288xbf16, #tpu.memory_space<vmem>>, vector<32x32xbf16>
    %c0_11 = arith.constant 0 : index
    %c96 = arith.constant 96 : index
    %10 = vector.load %arg3[%c0_11, %c96] : memref<32x288xbf16, #tpu.memory_space<vmem>>, vector<32x32xbf16>
    %c0_12 = arith.constant 0 : index
    %c128 = arith.constant 128 : index
    %11 = vector.load %arg3[%c0_12, %c128] : memref<32x288xbf16, #tpu.memory_space<vmem>>, vector<32x32xbf16>
    %c0_13 = arith.constant 0 : index
    %c160 = arith.constant 160 : index
    %12 = vector.load %arg3[%c0_13, %c160] : memref<32x288xbf16, #tpu.memory_space<vmem>>, vector<32x32xbf16>
    %c0_14 = arith.constant 0 : index
    %c192 = arith.constant 192 : index
    %13 = vector.load %arg3[%c0_14, %c192] : memref<32x288xbf16, #tpu.memory_space<vmem>>, vector<32x32xbf16>
    %c0_15 = arith.constant 0 : index
    %c224 = arith.constant 224 : index
    %14 = vector.load %arg3[%c0_15, %c224] : memref<32x288xbf16, #tpu.memory_space<vmem>>, vector<32x16xbf16>
    %c0_16 = arith.constant 0 : index
    %c240 = arith.constant 240 : index
    %15 = vector.load %arg3[%c0_16, %c240] : memref<32x288xbf16, #tpu.memory_space<vmem>>, vector<32x16xbf16>
    %c0_17 = arith.constant 0 : index
    %c256 = arith.constant 256 : index
    %16 = vector.load %arg3[%c0_17, %c256] : memref<32x288xbf16, #tpu.memory_space<vmem>>, vector<32x32xbf16>
    %c0_18 = arith.constant 0 : index
    %c0_19 = arith.constant 0 : index
    %c0_20 = arith.constant 0 : index
    %17 = vector.load %arg1[%c0_18, %c0_19, %c0_20] : memref<1x16x1xi32, #tpu.memory_space<vmem>>, vector<1x16x1xi32>
    %18 = vector.shape_cast %17 : vector<1x16x1xi32> to vector<16x1xi32>
    %19 = tpu.iota {dimensions = array<i32: 1>} : vector<16x32xi32>
    %20 = vector.broadcast %18 : vector<16x1xi32> to vector<16x32xi32>
    %21 = arith.cmpi eq, %19, %20 : vector<16x32xi32>
    %22 = arith.extui %21 : vector<16x32xi1> to vector<16x32xi32>
    %23 = arith.sitofp %22 : vector<16x32xi32> to vector<16x32xf32>
    %24 = arith.truncf %23 : vector<16x32xf32> to vector<16x32xbf16>
    %cst = arith.constant dense<0.000000e+00> : vector<16x32xf32>
    %25 = tpu.matmul %24, %16, %cst {dimension_numbers = #tpu.dot_dimension_numbers<[1], [0], [0], [1], [0, 0, 1, 1], [], []>} : vector<16x32xbf16>, vector<32x32xbf16>, vector<16x32xf32> -> vector<16x32xf32>
    %c0_21 = arith.constant 0 : index
    %c0_22 = arith.constant 0 : index
    %c0_23 = arith.constant 0 : index
    %26 = vector.load %arg7[%c0_21, %c0_22, %c0_23] : memref<1x16x32xf32, #tpu.memory_space<vmem>>, vector<1x16x32xf32>
    %27 = vector.shape_cast %26 : vector<1x16x32xf32> to vector<16x32xf32>
    %28 = vector.shape_cast %25 : vector<16x32xf32> to vector<1x16x32xf32>
    tpu.vector_store %arg7[%c0_21, %c0_22, %c0_23], %28 {strides = array<i32>} : memref<1x16x32xf32, #tpu.memory_space<vmem>>, vector<1x16x32xf32>,
    %c0_24 = arith.constant 0 : index
    %c0_25 = arith.constant 0 : index
    %c0_26 = arith.constant 0 : index
    %29 = vector.load %arg2[%c0_24, %c0_25, %c0_26] : memref<1x16x32xf32, #tpu.memory_space<vmem>>, vector<1x16x32xf32>
    %30 = vector.shape_cast %29 : vector<1x16x32xf32> to vector<16x32xf32>
    %31 = arith.truncf %30 : vector<16x32xf32> to vector<16x32xbf16>
    %32 = arith.truncf %25 : vector<16x32xf32> to vector<16x32xbf16>
    %cst_27 = arith.constant dense<0.000000e+00> : vector<16x32xf32>
    %33 = tpu.matmul %31, %7, %cst_27 {dimension_numbers = #tpu.dot_dimension_numbers<[1], [0], [0], [1], [0, 0, 1, 1], [], []>} : vector<16x32xbf16>, vector<32x32xbf16>, vector<16x32xf32> -> vector<16x32xf32>
    %cst_28 = arith.constant dense<0.000000e+00> : vector<16x32xf32>
    %34 = tpu.matmul %32, %8, %cst_28 {dimension_numbers = #tpu.dot_dimension_numbers<[1], [0], [0], [1], [0, 0, 1, 1], [], []>} : vector<16x32xbf16>, vector<32x32xbf16>, vector<16x32xf32> -> vector<16x32xf32>
    %35 = arith.addf %33, %34 : vector<16x32xf32>
    %36 = vector.broadcast %0 : vector<1x32xf32> to vector<16x32xf32>
    %37 = arith.addf %35, %36 : vector<16x32xf32>
    %cst_29 = arith.constant 0.000000e+00 : f32
    %38 = vector.broadcast %cst_29 : f32 to vector<16x32xf32>
    %39 = arith.maximumf %25, %38 : vector<16x32xf32>
    %cst_30 = arith.constant 0.000000e+00 : f32
    %40 = vector.broadcast %cst_30 : f32 to vector<16x32xf32>
    %41 = arith.maximumf %37, %40 : vector<16x32xf32>
    %42 = arith.truncf %41 : vector<16x32xf32> to vector<16x32xbf16>
    %43 = arith.truncf %39 : vector<16x32xf32> to vector<16x32xbf16>
    %cst_31 = arith.constant dense<0.000000e+00> : vector<16x32xf32>
    %44 = tpu.matmul %42, %9, %cst_31 {dimension_numbers = #tpu.dot_dimension_numbers<[1], [0], [0], [1], [0, 0, 1, 1], [], []>} : vector<16x32xbf16>, vector<32x32xbf16>, vector<16x32xf32> -> vector<16x32xf32>
    %cst_32 = arith.constant 0.176776692 : f32
    %45 = vector.broadcast %cst_32 : f32 to vector<16x32xf32>
    %46 = arith.mulf %44, %45 : vector<16x32xf32>
    %cst_33 = arith.constant dense<0.000000e+00> : vector<16x32xf32>
    %47 = tpu.matmul %43, %10, %cst_33 {dimension_numbers = #tpu.dot_dimension_numbers<[1], [0], [0], [1], [0, 0, 1, 1], [], []>} : vector<16x32xbf16>, vector<32x32xbf16>, vector<16x32xf32> -> vector<16x32xf32>
    %cst_34 = arith.constant dense<0.000000e+00> : vector<16x32xf32>
    %48 = tpu.matmul %42, %11, %cst_34 {dimension_numbers = #tpu.dot_dimension_numbers<[1], [0], [0], [1], [0, 0, 1, 1], [], []>} : vector<16x32xbf16>, vector<32x32xbf16>, vector<16x32xf32> -> vector<16x32xf32>
    %49 = arith.truncf %46 : vector<16x32xf32> to vector<16x32xbf16>
    %50 = arith.truncf %47 : vector<16x32xf32> to vector<16x32xbf16>
    %cst_35 = arith.constant dense<0.000000e+00> : vector<16x16xf32>
    %51 = tpu.matmul %49, %50, %cst_35 {dimension_numbers = #tpu.dot_dimension_numbers<[1], [1], [0], [0], [0, 0, 1, 0], [], []>} : vector<16x32xbf16>, vector<16x32xbf16>, vector<16x16xf32> -> vector<16x16xf32>
    %52 = vector.broadcast %1 : vector<1x32xf32> to vector<16x32xf32>
    %53 = arith.mulf %46, %52 : vector<16x32xf32>
    %cst_36 = arith.constant dense<0.000000e+00> : vector<16xf32>
    %54 = vector.multi_reduction <add>, %53, %cst_36 [1] : vector<16x32xf32> to vector<16xf32>
    %55 = vector.shape_cast %54 : vector<16xf32> to vector<16x1xf32>
    %cst_37 = arith.constant dense<0xFF800000> : vector<16xf32>
    %56 = vector.multi_reduction <maximumf>, %51, %cst_37 [1] : vector<16x16xf32> to vector<16xf32>
    %57 = vector.shape_cast %56 : vector<16xf32> to vector<16x1xf32>
    %58 = arith.maximumf %57, %55 : vector<16x1xf32>
    %59 = vector.broadcast %58 : vector<16x1xf32> to vector<16x16xf32>
    %60 = arith.subf %51, %59 : vector<16x16xf32>
    %61 = math.exp %60 : vector<16x16xf32>
    %62 = arith.subf %55, %58 : vector<16x1xf32>
    %63 = math.exp %62 : vector<16x1xf32>
    %cst_38 = arith.constant dense<0.000000e+00> : vector<16xf32>
    %64 = vector.multi_reduction <add>, %61, %cst_38 [1] : vector<16x16xf32> to vector<16xf32>
    %65 = vector.shape_cast %64 : vector<16xf32> to vector<16x1xf32>
    %66 = arith.addf %65, %63 : vector<16x1xf32>
    %67 = arith.truncf %61 : vector<16x16xf32> to vector<16x16xbf16>
    %68 = arith.truncf %48 : vector<16x32xf32> to vector<16x32xbf16>
    %cst_39 = arith.constant dense<0.000000e+00> : vector<16x32xf32>
    %69 = tpu.matmul %67, %68, %cst_39 {dimension_numbers = #tpu.dot_dimension_numbers<[1], [0], [0], [1], [0, 0, 1, 1], [], []>} : vector<16x16xbf16>, vector<16x32xbf16>, vector<16x32xf32> -> vector<16x32xf32>
    %70 = tpu.reciprocal %66 {approx = true} : vector<16x1xf32> -> vector<16x1xf32>
    %71 = vector.broadcast %70 : vector<16x1xf32> to vector<16x32xf32>
    %72 = arith.mulf %69, %71 : vector<16x32xf32>
    %73 = arith.mulf %72, %41 : vector<16x32xf32>
    %74 = arith.truncf %73 : vector<16x32xf32> to vector<16x32xbf16>
    %cst_40 = arith.constant dense<0.000000e+00> : vector<16x16xf32>
    %75 = tpu.matmul %74, %14, %cst_40 {dimension_numbers = #tpu.dot_dimension_numbers<[1], [0], [0], [1], [0, 0, 1, 1], [], []>} : vector<16x32xbf16>, vector<32x16xbf16>, vector<16x16xf32> -> vector<16x16xf32>
    %76 = vector.extract_strided_slice %2 {offsets = [0, 0], sizes = [1, 16], strides = [1, 1]} : vector<1x32xf32> to vector<1x16xf32>
    %77 = vector.broadcast %76 : vector<1x16xf32> to vector<16x16xf32>
    %78 = arith.addf %75, %77 : vector<16x16xf32>
    %cst_41 = arith.constant 0.000000e+00 : f32
    %79 = vector.broadcast %cst_41 : f32 to vector<16x16xf32>
    %80 = arith.maximumf %78, %79 : vector<16x16xf32>
    %81 = arith.subf %41, %72 : vector<16x32xf32>
    %82 = arith.truncf %81 : vector<16x32xf32> to vector<16x32xbf16>
    %cst_42 = arith.constant dense<0.000000e+00> : vector<16x16xf32>
    %83 = tpu.matmul %82, %15, %cst_42 {dimension_numbers = #tpu.dot_dimension_numbers<[1], [0], [0], [1], [0, 0, 1, 1], [], []>} : vector<16x32xbf16>, vector<32x16xbf16>, vector<16x16xf32> -> vector<16x16xf32>
    %84 = vector.extract_strided_slice %2 {offsets = [0, 16], sizes = [1, 16], strides = [1, 1]} : vector<1x32xf32> to vector<1x16xf32>
    %85 = vector.broadcast %84 : vector<1x16xf32> to vector<16x16xf32>
    %86 = arith.addf %83, %85 : vector<16x16xf32>
    %cst_43 = arith.constant 0.000000e+00 : f32
    %87 = vector.broadcast %cst_43 : f32 to vector<16x16xf32>
    %88 = arith.maximumf %86, %87 : vector<16x16xf32>
    %89 = tpu.concatenate %80, %88 in 1 : vector<16x16xf32>, vector<16x16xf32> -> vector<16x32xf32>
    %90 = arith.truncf %89 : vector<16x32xf32> to vector<16x32xbf16>
    %cst_44 = arith.constant dense<0.000000e+00> : vector<16x32xf32>
    %91 = tpu.matmul %90, %13, %cst_44 {dimension_numbers = #tpu.dot_dimension_numbers<[1], [0], [0], [1], [0, 0, 1, 1], [], []>} : vector<16x32xbf16>, vector<32x32xbf16>, vector<16x32xf32> -> vector<16x32xf32>
    %cst_45 = arith.constant dense<0.000000e+00> : vector<16x32xf32>
    %92 = tpu.matmul %42, %12, %cst_45 {dimension_numbers = #tpu.dot_dimension_numbers<[1], [0], [0], [1], [0, 0, 1, 1], [], []>} : vector<16x32xbf16>, vector<32x32xbf16>, vector<16x32xf32> -> vector<16x32xf32>
    %93 = arith.addf %91, %92 : vector<16x32xf32>
    %94 = vector.broadcast %3 : vector<1x32xf32> to vector<16x32xf32>
    %95 = arith.addf %93, %94 : vector<16x32xf32>
    %c0_46 = arith.constant 0 : index
    %c0_47 = arith.constant 0 : index
    %96 = vector.load %arg5[%c0_46, %c0_47] : memref<64x1024xbf16, #tpu.memory_space<vmem>>, vector<32x1024xbf16>
    %c32_48 = arith.constant 32 : index
    %c0_49 = arith.constant 0 : index
    %97 = vector.load %arg5[%c32_48, %c0_49] : memref<64x1024xbf16, #tpu.memory_space<vmem>>, vector<32x1024xbf16>
    %98 = arith.truncf %95 : vector<16x32xf32> to vector<16x32xbf16>
    %cst_50 = arith.constant dense<0.000000e+00> : vector<16x1024xf32>
    %99 = tpu.matmul %98, %96, %cst_50 {dimension_numbers = #tpu.dot_dimension_numbers<[1], [0], [0], [1], [0, 0, 1, 1], [], []>} : vector<16x32xbf16>, vector<32x1024xbf16>, vector<16x1024xf32> -> vector<16x1024xf32>
    %c0_51 = arith.constant 0 : index
    %c0_52 = arith.constant 0 : index
    %100 = vector.load %arg6[%c0_51, %c0_52] : memref<1x1024xf32, #tpu.memory_space<vmem>>, vector<1x1024xf32>
    %101 = vector.broadcast %100 : vector<1x1024xf32> to vector<16x1024xf32>
    %102 = arith.addf %99, %101 : vector<16x1024xf32>
    %cst_53 = arith.constant 0.000000e+00 : f32
    %103 = vector.broadcast %cst_53 : f32 to vector<16x1024xf32>
    %104 = arith.maximumf %102, %103 : vector<16x1024xf32>
    %105 = arith.truncf %104 : vector<16x1024xf32> to vector<16x1024xbf16>
    %cst_54 = arith.constant dense<0.000000e+00> : vector<16x32xf32>
    %106 = tpu.matmul %105, %97, %cst_54 {dimension_numbers = #tpu.dot_dimension_numbers<[1], [1], [0], [0], [0, 0, 1, 0], [], []>} : vector<16x1024xbf16>, vector<32x1024xbf16>, vector<16x32xf32> -> vector<16x32xf32>
    %107 = vector.broadcast %4 : vector<1x32xf32> to vector<16x32xf32>
    %108 = arith.addf %106, %107 : vector<16x32xf32>
    %109 = arith.addf %95, %108 : vector<16x32xf32>
    %cst_55 = arith.constant dense<0.000000e+00> : vector<16xf32>
    %110 = vector.multi_reduction <add>, %109, %cst_55 [1] : vector<16x32xf32> to vector<16xf32>
    %111 = vector.shape_cast %110 : vector<16xf32> to vector<16x1xf32>
    %cst_56 = arith.constant 3.200000e+01 : f32
    %112 = vector.broadcast %cst_56 : f32 to vector<16x1xf32>
    %113 = arith.divf %111, %112 : vector<16x1xf32>
    %114 = vector.broadcast %113 : vector<16x1xf32> to vector<16x32xf32>
    %115 = arith.subf %109, %114 : vector<16x32xf32>
    %116 = arith.mulf %115, %115 : vector<16x32xf32>
    %cst_57 = arith.constant dense<0.000000e+00> : vector<16xf32>
    %117 = vector.multi_reduction <add>, %116, %cst_57 [1] : vector<16x32xf32> to vector<16xf32>
    %118 = vector.shape_cast %117 : vector<16xf32> to vector<16x1xf32>
    %cst_58 = arith.constant 3.200000e+01 : f32
    %119 = vector.broadcast %cst_58 : f32 to vector<16x1xf32>
    %120 = arith.divf %118, %119 : vector<16x1xf32>
    %121 = vector.broadcast %113 : vector<16x1xf32> to vector<16x32xf32>
    %122 = arith.subf %109, %121 : vector<16x32xf32>
    %cst_59 = arith.constant 9.99999974E-6 : f32
    %123 = vector.broadcast %cst_59 : f32 to vector<16x1xf32>
    %124 = arith.addf %120, %123 : vector<16x1xf32>
    %125 = math.rsqrt %124 : vector<16x1xf32>
    %126 = vector.broadcast %125 : vector<16x1xf32> to vector<16x32xf32>
    %127 = arith.mulf %122, %126 : vector<16x32xf32>
    %128 = vector.broadcast %5 : vector<1x32xf32> to vector<16x32xf32>
    %129 = arith.mulf %127, %128 : vector<16x32xf32>
    %130 = vector.broadcast %6 : vector<1x32xf32> to vector<16x32xf32>
    %131 = arith.addf %129, %130 : vector<16x32xf32>
    %cst_60 = arith.constant 0.000000e+00 : f32
    %132 = vector.broadcast %cst_60 : f32 to vector<16x32xf32>
    %133 = arith.maximumf %131, %132 : vector<16x32xf32>
    %c0_61 = arith.constant 0 : index
    %c0_62 = arith.constant 0 : index
    %c0_63 = arith.constant 0 : index
    %134 = vector.load %arg8[%c0_61, %c0_62, %c0_63] : memref<1x16x32xf32, #tpu.memory_space<vmem>>, vector<1x16x32xf32>
    %135 = vector.shape_cast %134 : vector<1x16x32xf32> to vector<16x32xf32>
    %136 = vector.shape_cast %133 : vector<16x32xf32> to vector<1x16x32xf32>
    tpu.vector_store %arg8[%c0_61, %c0_62, %c0_63], %136 {strides = array<i32>} : memref<1x16x32xf32, #tpu.memory_space<vmem>>, vector<1x16x32xf32>,
    return
  }
  func.func @transform_0(%arg0: i32) -> (i32, i32, i32) {
    %c0_i32 = arith.constant 0 : i32
    %c0_i32_0 = arith.constant 0 : i32
    %c0_i32_1 = arith.constant 0 : i32
    return %arg0, %c0_i32, %c0_i32_0 : i32, i32, i32
  }
  func.func @transform_1(%arg0: i32) -> (i32, i32, i32) {
    %c0_i32 = arith.constant 0 : i32
    %c0_i32_0 = arith.constant 0 : i32
    %c0_i32_1 = arith.constant 0 : i32
    return %arg0, %c0_i32, %c0_i32_0 : i32, i32, i32
  }
  func.func @transform_2(%arg0: i32) -> (i32, i32) {
    %c0_i32 = arith.constant 0 : i32
    %c0_i32_0 = arith.constant 0 : i32
    %c0_i32_1 = arith.constant 0 : i32
    return %c0_i32, %c0_i32_0 : i32, i32
  }
  func.func @transform_3(%arg0: i32) -> (i32, i32) {
    %c0_i32 = arith.constant 0 : i32
    %c0_i32_0 = arith.constant 0 : i32
    %c0_i32_1 = arith.constant 0 : i32
    return %c0_i32, %c0_i32_0 : i32, i32
  }
  func.func @transform_4(%arg0: i32) -> (i32, i32) {
    %c0_i32 = arith.constant 0 : i32
    %c0_i32_0 = arith.constant 0 : i32
    %c0_i32_1 = arith.constant 0 : i32
    return %c0_i32, %c0_i32_0 : i32, i32
  }
  func.func @transform_5(%arg0: i32) -> (i32, i32) {
    %c0_i32 = arith.constant 0 : i32
    %c0_i32_0 = arith.constant 0 : i32
    %c0_i32_1 = arith.constant 0 : i32
    return %c0_i32, %c0_i32_0 : i32, i32
  }
  func.func @transform_6(%arg0: i32) -> (i32, i32, i32) {
    %c0_i32 = arith.constant 0 : i32
    %c0_i32_0 = arith.constant 0 : i32
    %c0_i32_1 = arith.constant 0 : i32
    return %arg0, %c0_i32, %c0_i32_0 : i32, i32, i32
  }
  func.func @transform_7(%arg0: i32) -> (i32, i32, i32) {
    %c0_i32 = arith.constant 0 : i32
    %c0_i32_0 = arith.constant 0 : i32
    %c0_i32_1 = arith.constant 0 : i32
    return %arg0, %c0_i32, %c0_i32_0 : i32, i32, i32
  }
}

</mosaic_0001>

<llo_original>
// kernel: lv_attention_vkv_forward.1
$region0: #{lv_attention_vkv_forward.1}
  #allocation0 [shape = 'u32[]', space=smem, size = 0x4, offset = 0x4, fixed_abs, tag = 'smem constant byte address 0x4 - core index']
  #allocation1 [shape = 'u32[144,128]{1,0:T(1,128)}', space=vmem, size = 0x12000, scoped, tag = 'internal scratch']
  %s0 = inlined_call_operand.vmem [shape: s32[4,16,1], index: 0, kind: input, shape index: {}]
  %s1 = inlined_call_operand.vmem [shape: f32[4,16,32], index: 1, kind: input, shape index: {}]
  %s2 = inlined_call_operand.hbm [shape: bf16[32,288], index: 2, kind: input, shape index: {}]
  %s3 = inlined_call_operand.vmem [shape: f32[8,32], index: 3, kind: input, shape index: {}]
  %s4 = inlined_call_operand.hbm [shape: bf16[64,1024], index: 4, kind: input, shape index: {}]
  %s5 = inlined_call_operand.hbm [shape: f32[1,1024], index: 5, kind: input, shape index: {}]
  %s6 = inlined_call_operand.hbm [shape: f32[4,16,32], index: 6, kind: output, shape index: {0}]
  %s7 = inlined_call_operand.hbm [shape: f32[4,16,32], index: 7, kind: output, shape index: {1}]
  %8 = xla_tuple %s6, %s7
  %s9 = sld [smem:[#allocation0]]
  $region77: #{lv_attention_vkv_forward.1} parent=0
    _
  %s11 = ssub.s32 1, %s9
  %s12 = scalar_select 0, %s11, %s9
  $region1: #{lv_attention_vkv_forward.1} parent=0
    #allocation2 [shape = 'u8[24576]{0}', space=vmem, size = 0x6000, scoped, tag = 'input window, operand 2, single buffered']
    #allocation3 [shape = 's32[2]{0}', space=sflag, size = 0x8, scoped, tag = 'scoped memory for lv_attention_vkv_forward.1']
    #allocation4 [shape = 's32[2]{0}', space=sflag, size = 0x8, scoped, tag = 'scoped memory for lv_attention_vkv_forward.1']
    #allocation5 [shape = 'u8[131072]{0}', space=vmem, size = 0x20000, scoped, tag = 'input window, operand 4, single buffered']
    #allocation6 [shape = 's32[1]{0}', space=sflag, size = 0x4, scoped, tag = 'scoped memory for lv_attention_vkv_forward.1']
    #allocation7 [shape = 'u8[4096]{0}', space=vmem, size = 0x1000, scoped, tag = 'input window, operand 5, single buffered']
    #allocation8 [shape = 'u8[16384]{0}', space=vmem, size = 0x4000, scoped, tag = 'output window, operand 0']
    #allocation9 [shape = 'u8[16384]{0}', space=vmem, size = 0x4000, scoped, tag = 'output window, operand 1']
    #allocation10 [shape = 's32[2]{0}', space=sflag, size = 0x8, scoped, tag = 'scoped memory for lv_attention_vkv_forward.1']
    %13 = vsyncpa [#allocation3], 0
    %14 = vsyncpa [#allocation6], 0
    %15 = vsyncpa [#allocation4], 0
    %s16 = scalar_lea.sflag [#allocation4], 1
    %17 = vsyncpa %s16, 0
    %18 = vsyncpa [#allocation10], 0
    %s19 = scalar_lea.sflag [#allocation10], 1
    %20 = vsyncpa %s19, 0
    loop: start=0, step=1, limit=6
    $region2: #{lv_attention_vkv_forward.1} parent=1 // loop_pre_header
      _
    $region3: #{lv_attention_vkv_forward.1} parent=1 // loop_header
      %s22 = sphi 0, %s26
      %p23 = scmp.ge.s32.totalorder %s22, 6
      %s32 = sphi 0, %s34
      %s35 = sphi 0, %s32
      %s36 = sphi 0, %s35
      %s52 = sphi 0, %s36
      %s58 = sphi 0, %s60
      %s61 = sphi 0, %s58
      %s62 = sphi 0, %s61
      %s78 = sphi 0, %s62
      %s82 = sphi 0, %s82
      %s84 = sphi 0, %s82
      %s85 = sphi 0, %s84
      %s99 = sphi 0, %s85
      %s103 = sphi 0, %s103
      %s105 = sphi 0, %s103
      %s106 = sphi 0, %s105
      %s120 = sphi 0, %s106
      %s124 = sphi 0, %s124
      %s126 = sphi 0, %s124
      %s127 = sphi 0, %s126
      %s141 = sphi 0, %s127
      %s145 = sphi 0, %s145
      %s147 = sphi 0, %s145
      %s148 = sphi 0, %s147
      %s162 = sphi 0, %s148
      %s168 = sphi 0, %s170
      %s171 = sphi 0, %s168
      %s172 = sphi 0, %s171
      %s188 = sphi 0, %s172
      %s194 = sphi 0, %s196
      %s197 = sphi 0, %s194
      %s198 = sphi 0, %s197
      %s214 = sphi 0, %s198
    $region4: #{lv_attention_vkv_forward.1} parent=1 // loop_header_branch
      %25 = sbr.rel (%p23) target = $region8
    $region5: #{lv_attention_vkv_forward.1} parent=1 // loop_body
      %s27 = ssub.s32 %s22, 1
      %s28 = ssub.s32 %s22, 2
      %s29 = sadd.s32 %s22, 1
      %s30 = ssub.s32 %s22, %s29
      %p31 = scmp.eq.s32.totalorder %s30, 0
      %s33 = sadd.s32 %s32, 1
      %s34 = scalar_select %p31, %s32, %s33
      %p37 = pneg %p31
      %p38 = scmp.eq.s32.totalorder %s22, 3
      %p39 = por %p37, %p38
      %p40 = scmp.ne.s32.totalorder %s32, %s35
      %p41 = scmp.eq.s32.totalorder %s22, 0
      %p42 = por %p40, %p41
      %p43 = scmp.ne.s32.totalorder %s32, %s35
      %p44 = scmp.eq.s32.totalorder %s27, 3
      %p45 = por %p43, %p44
      %p46 = scmp.ne.s32.totalorder %s35, %s36
      %p47 = scmp.eq.s32.totalorder %s27, 0
      %p48 = por %p46, %p47
      %p49 = scmp.ne.s32.totalorder %s35, %s36
      %p50 = scmp.eq.s32.totalorder %s28, 3
      %p51 = por %p49, %p50
      %p53 = scmp.ne.s32.totalorder %s36, %s52
      %p54 = scmp.eq.s32.totalorder %s28, 0
      %p55 = por %p53, %p54
      %s56 = ssub.s32 %s22, %s29
      %p57 = scmp.eq.s32.totalorder %s56, 0
      %s59 = sadd.s32 %s58, 1
      %s60 = scalar_select %p57, %s58, %s59
      %p63 = pneg %p57
      %p64 = scmp.eq.s32.totalorder %s22, 3
      %p65 = por %p63, %p64
      %p66 = scmp.ne.s32.totalorder %s58, %s61
      %p67 = scmp.eq.s32.totalorder %s22, 0
      %p68 = por %p66, %p67
      %p69 = scmp.ne.s32.totalorder %s58, %s61
      %p70 = scmp.eq.s32.totalorder %s27, 3
      %p71 = por %p69, %p70
      %p72 = scmp.ne.s32.totalorder %s61, %s62
      %p73 = scmp.eq.s32.totalorder %s27, 0
      %p74 = por %p72, %p73
      %p75 = scmp.ne.s32.totalorder %s61, %s62
      %p76 = scmp.eq.s32.totalorder %s28, 3
      %p77 = por %p75, %p76
      %p79 = scmp.ne.s32.totalorder %s62, %s78
      %p80 = scmp.eq.s32.totalorder %s28, 0
      %p81 = por %p79, %p80
      %s83 = sadd.s32 %s82, 1
      %p86 = scmp.eq.s32.totalorder %s22, 3
      %p87 = scmp.ne.s32.totalorder %s82, %s84
      %p88 = scmp.eq.s32.totalorder %s22, 0
      %p89 = por %p87, %p88
      %p90 = scmp.ne.s32.totalorder %s82, %s84
      %p91 = scmp.eq.s32.totalorder %s27, 3
      %p92 = por %p90, %p91
      %p93 = scmp.ne.s32.totalorder %s84, %s85
      %p94 = scmp.eq.s32.totalorder %s27, 0
      %p95 = por %p93, %p94
      %p96 = scmp.ne.s32.totalorder %s84, %s85
      %p97 = scmp.eq.s32.totalorder %s28, 3
      %p98 = por %p96, %p97
      %p100 = scmp.ne.s32.totalorder %s85, %s99
      %p101 = scmp.eq.s32.totalorder %s28, 0
      %p102 = por %p100, %p101
      %s104 = sadd.s32 %s103, 1
      %p107 = scmp.eq.s32.totalorder %s22, 3
      %p108 = scmp.ne.s32.totalorder %s103, %s105
      %p109 = scmp.eq.s32.totalorder %s22, 0
      %p110 = por %p108, %p109
      %p111 = scmp.ne.s32.totalorder %s103, %s105
      %p112 = scmp.eq.s32.totalorder %s27, 3
      %p113 = por %p111, %p112
      %p114 = scmp.ne.s32.totalorder %s105, %s106
      %p115 = scmp.eq.s32.totalorder %s27, 0
      %p116 = por %p114, %p115
      %p117 = scmp.ne.s32.totalorder %s105, %s106
      %p118 = scmp.eq.s32.totalorder %s28, 3
      %p119 = por %p117, %p118
      %p121 = scmp.ne.s32.totalorder %s106, %s120
      %p122 = scmp.eq.s32.totalorder %s28, 0
      %p123 = por %p121, %p122
      %s125 = sadd.s32 %s124, 1
      %p128 = scmp.eq.s32.totalorder %s22, 3
      %p129 = scmp.ne.s32.totalorder %s124, %s126
      %p130 = scmp.eq.s32.totalorder %s22, 0
      %p131 = por %p129, %p130
      %p132 = scmp.ne.s32.totalorder %s124, %s126
      %p133 = scmp.eq.s32.totalorder %s27, 3
      %p134 = por %p132, %p133
      %p135 = scmp.ne.s32.totalorder %s126, %s127
      %p136 = scmp.eq.s32.totalorder %s27, 0
      %p137 = por %p135, %p136
      %p138 = scmp.ne.s32.totalorder %s126, %s127
      %p139 = scmp.eq.s32.totalorder %s28, 3
      %p140 = por %p138, %p139
      %p142 = scmp.ne.s32.totalorder %s127, %s141
      %p143 = scmp.eq.s32.totalorder %s28, 0
      %p144 = por %p142, %p143
      %s146 = sadd.s32 %s145, 1
      %p149 = scmp.eq.s32.totalorder %s22, 3
      %p150 = scmp.ne.s32.totalorder %s145, %s147
      %p151 = scmp.eq.s32.totalorder %s22, 0
      %p152 = por %p150, %p151
      %p153 = scmp.ne.s32.totalorder %s145, %s147
      %p154 = scmp.eq.s32.totalorder %s27, 3
      %p155 = por %p153, %p154
      %p156 = scmp.ne.s32.totalorder %s147, %s148
      %p157 = scmp.eq.s32.totalorder %s27, 0
      %p158 = por %p156, %p157
      %p159 = scmp.ne.s32.totalorder %s147, %s148
      %p160 = scmp.eq.s32.totalorder %s28, 3
      %p161 = por %p159, %p160
      %p163 = scmp.ne.s32.totalorder %s148, %s162
      %p164 = scmp.eq.s32.totalorder %s28, 0
      %p165 = por %p163, %p164
      %s166 = ssub.s32 %s22, %s29
      %p167 = scmp.eq.s32.totalorder %s166, 0
      %s169 = sadd.s32 %s168, 1
      %s170 = scalar_select %p167, %s168, %s169
      %p173 = pneg %p167
      %p174 = scmp.eq.s32.totalorder %s22, 3
      %p175 = por %p173, %p174
      %p176 = scmp.ne.s32.totalorder %s168, %s171
      %p177 = scmp.eq.s32.totalorder %s22, 0
      %p178 = por %p176, %p177
      %p179 = scmp.ne.s32.totalorder %s168, %s171
      %p180 = scmp.eq.s32.totalorder %s27, 3
      %p181 = por %p179, %p180
      %p182 = scmp.ne.s32.totalorder %s171, %s172
      %p183 = scmp.eq.s32.totalorder %s27, 0
      %p184 = por %p182, %p183
      %p185 = scmp.ne.s32.totalorder %s171, %s172
      %p186 = scmp.eq.s32.totalorder %s28, 3
      %p187 = por %p185, %p186
      %p189 = scmp.ne.s32.totalorder %s172, %s188
      %p190 = scmp.eq.s32.totalorder %s28, 0
      %p191 = por %p189, %p190
      %s192 = ssub.s32 %s22, %s29
      %p193 = scmp.eq.s32.totalorder %s192, 0
      %s195 = sadd.s32 %s194, 1
      %s196 = scalar_select %p193, %s194, %s195
      %p199 = pneg %p193
      %p200 = scmp.eq.s32.totalorder %s22, 3
      %p201 = por %p199, %p200
      %p202 = scmp.ne.s32.totalorder %s194, %s197
      %p203 = scmp.eq.s32.totalorder %s22, 0
      %p204 = por %p202, %p203
      %p205 = scmp.ne.s32.totalorder %s194, %s197
      %p206 = scmp.eq.s32.totalorder %s27, 3
      %p207 = por %p205, %p206
      %p208 = scmp.ne.s32.totalorder %s197, %s198
      %p209 = scmp.eq.s32.totalorder %s27, 0
      %p210 = por %p208, %p209
      %p211 = scmp.ne.s32.totalorder %s197, %s198
      %p212 = scmp.eq.s32.totalorder %s28, 3
      %p213 = por %p211, %p212
      %p215 = scmp.ne.s32.totalorder %s198, %s214
      %p216 = scmp.eq.s32.totalorder %s28, 0
      %p217 = por %p215, %p216
      %p218 = scmp.le.s32.totalorder 1, %s22
      %p219 = scmp.lt.s32.totalorder %s22, 5
      %p220 = pnand %p218, %p219
      %p221 = pneg %p220
      // Predicated region
      $region9: #{lv_attention_vkv_forward.1} parent=5 // pred_check
        _
      $region10: #{lv_attention_vkv_forward.1} parent=5 // pred_check_branch
        %223 = sbr.rel (%p220) target = $region12
      $region11: #{lv_attention_vkv_forward.1} parent=5 // pred_region
        %s224 = ssub.s32 %s22, 1
        // Predicated region
        $region13: #{lv_attention_vkv_forward.1} parent=11 // pred_check
          %p225 = pneg %p95
        $region14: #{lv_attention_vkv_forward.1} parent=11 // pred_check_branch
          %227 = sbr.rel (%p225) target = $region16
        $region15: #{lv_attention_vkv_forward.1} parent=11 // pred_region
          %s229 = ssub.s32 768, 768
          %230 = vsyncadd [#allocation3], %s229
          %s231 = sshll.u32 [#allocation2], 4
          %s232 = int_to_ptr.vmem [resolvable:$true] %s231
          %237 = dma.hbm_to_vmem [thread:$0]  %s2, 768, %s232, [#allocation3], 192, 192, 12
        $region16: #{lv_attention_vkv_forward.1} parent=11 // pred_fallthru
          _
        // Predicated region
        $region17: #{lv_attention_vkv_forward.1} parent=11 // pred_check
          %p238 = pneg %p116
        $region18: #{lv_attention_vkv_forward.1} parent=11 // pred_check_branch
          %240 = sbr.rel (%p238) target = $region20
        $region19: #{lv_attention_vkv_forward.1} parent=11 // pred_region
          _
        $region20: #{lv_attention_vkv_forward.1} parent=11 // pred_fallthru
          _
        // Predicated region
        $region21: #{lv_attention_vkv_forward.1} parent=11 // pred_check
          %p241 = pneg %p137
        $region22: #{lv_attention_vkv_forward.1} parent=11 // pred_check_branch
          %243 = sbr.rel (%p241) target = $region24
        $region23: #{lv_attention_vkv_forward.1} parent=11 // pred_region
          %s245 = ssub.s32 4096, 4096
          %246 = vsyncadd [#allocation6], %s245
          %s247 = sshll.u32 [#allocation5], 4
          %s248 = int_to_ptr.vmem [resolvable:$true] %s247
          %253 = dma.hbm_to_vmem [thread:$0]  %s4, 4096, %s248, [#allocation6], 512, 512, 32
        $region24: #{lv_attention_vkv_forward.1} parent=11 // pred_fallthru
          _
        // Predicated region
        $region25: #{lv_attention_vkv_forward.1} parent=11 // pred_check
          %p254 = pneg %p158
        $region26: #{lv_attention_vkv_forward.1} parent=11 // pred_check_branch
          %256 = sbr.rel (%p254) target = $region28
        $region27: #{lv_attention_vkv_forward.1} parent=11 // pred_region
          %s258 = ssub.s32 128, 128
          %259 = vsyncadd [#allocation6], %s258
          %s261 = sshll.u32 [#allocation7], 4
          %s262 = int_to_ptr.vmem [resolvable:$true] %s261
          %264 = dma.hbm_to_vmem [thread:$0]  %s5, 128, %s262, [#allocation6]
        $region28: #{lv_attention_vkv_forward.1} parent=11 // pred_fallthru
          _
      $region12: #{lv_attention_vkv_forward.1} parent=5 // pred_fallthru
        _
      %p265 = scmp.lt.s32.totalorder %s22, 4
      // Predicated region
      $region29: #{lv_attention_vkv_forward.1} parent=5 // pred_check
        %p266 = pneg %p265
      $region30: #{lv_attention_vkv_forward.1} parent=5 // pred_check_branch
        %268 = sbr.rel (%p266) target = $region32
      $region31: #{lv_attention_vkv_forward.1} parent=5 // pred_region
        // Predicated region
        $region33: #{lv_attention_vkv_forward.1} parent=31 // pred_check
          %p269 = pneg %p42
        $region34: #{lv_attention_vkv_forward.1} parent=31 // pred_check_branch
          %271 = sbr.rel (%p269) target = $region36
        $region35: #{lv_attention_vkv_forward.1} parent=31 // pred_region
          %p272 = scmp.lt.s32.totalorder %s22, 3
          %s273 = scalar_select %p272, %s22, 3
          %s274 = smul.addr %s273, 2
          %s275 = smul.addr %s274, 8
          %s276 = scalar_lea.vmem %s0, %s275
        $region36: #{lv_attention_vkv_forward.1} parent=31 // pred_fallthru
          _
        // Predicated region
        $region37: #{lv_attention_vkv_forward.1} parent=31 // pred_check
          %p277 = pneg %p68
        $region38: #{lv_attention_vkv_forward.1} parent=31 // pred_check_branch
          %279 = sbr.rel (%p277) target = $region40
        $region39: #{lv_attention_vkv_forward.1} parent=31 // pred_region
          %p280 = scmp.lt.s32.totalorder %s22, 3
          %s281 = scalar_select %p280, %s22, 3
          %s282 = smul.addr %s281, 2
          %s283 = smul.addr %s282, 8
          %s284 = scalar_lea.vmem %s1, %s283
        $region40: #{lv_attention_vkv_forward.1} parent=31 // pred_fallthru
          _
      $region32: #{lv_attention_vkv_forward.1} parent=5 // pred_fallthru
        _
      %p285 = scmp.le.s32.totalorder 1, %s22
      %p286 = scmp.lt.s32.totalorder %s22, 5
      %p287 = pnand %p285, %p286
      %p288 = pneg %p287
      // Predicated region
      $region41: #{lv_attention_vkv_forward.1} parent=5 // pred_check
        _
      $region42: #{lv_attention_vkv_forward.1} parent=5 // pred_check_branch
        %290 = sbr.rel (%p287) target = $region44
      $region43: #{lv_attention_vkv_forward.1} parent=5 // pred_region
        %s291 = ssub.s32 %s22, 1
        // Predicated region
        $region45: #{lv_attention_vkv_forward.1} parent=43 // pred_check
          %p292 = pneg %p95
        $region46: #{lv_attention_vkv_forward.1} parent=43 // pred_check_branch
          %294 = sbr.rel (%p292) target = $region48
        $region47: #{lv_attention_vkv_forward.1} parent=43 // pred_region
          %295 = dma.done [#allocation3], 768
        $region48: #{lv_attention_vkv_forward.1} parent=43 // pred_fallthru
          _
        // Predicated region
        $region49: #{lv_attention_vkv_forward.1} parent=43 // pred_check
          %p296 = pneg %p137
        $region50: #{lv_attention_vkv_forward.1} parent=43 // pred_check_branch
          %298 = sbr.rel (%p296) target = $region52
        $region51: #{lv_attention_vkv_forward.1} parent=43 // pred_region
          %299 = dma.done [#allocation6], 4096
        $region52: #{lv_attention_vkv_forward.1} parent=43 // pred_fallthru
          _
        // Predicated region
        $region53: #{lv_attention_vkv_forward.1} parent=43 // pred_check
          %p300 = pneg %p158
        $region54: #{lv_attention_vkv_forward.1} parent=43 // pred_check_branch
          %302 = sbr.rel (%p300) target = $region56
        $region55: #{lv_attention_vkv_forward.1} parent=43 // pred_region
          %303 = dma.done [#allocation6], 128
        $region56: #{lv_attention_vkv_forward.1} parent=43 // pred_fallthru
          _
        %p304 = scmp.lt.s32.totalorder %s27, 3
        %s305 = scalar_select %p304, %s27, 3
        %s306 = smul.addr %s305, 2
        %s307 = smul.addr %s306, 8
        %s308 = scalar_lea.vmem %s0, %s307
        %p309 = pneg %p48
        %p310 = pneg %p45
        %p311 = scmp.lt.s32.totalorder %s27, 3
        %s312 = scalar_select %p311, %s27, 3
        %s313 = smul.addr %s312, 2
        %s314 = smul.addr %s313, 8
        %s315 = scalar_lea.vmem %s1, %s314
        %p316 = pneg %p74
        %p317 = pneg %p71
        %p318 = pneg %p95
        %p319 = pneg %p92
        %p320 = pneg %p116
        %p321 = pneg %p113
        %p322 = pneg %p137
        %p323 = pneg %p134
        %p324 = pneg %p158
        %p325 = pneg %p155
        %p326 = pneg %p184
        %p327 = pneg %p181
        %s328 = sand.u32 %s171, 1
        %s329 = scalar_lea.sflag [#allocation4], %s328
        %s330 = sand.u32 %s171, 1
        %s331 = smul.addr %s330, 16
        %s332 = scalar_lea.vmem [#allocation8], %s331
        %p333 = pneg %p210
        %p334 = pneg %p207
        %s335 = sand.u32 %s197, 1
        %s336 = scalar_lea.sflag [#allocation10], %s335
        %s337 = sand.u32 %s197, 1
        %s338 = smul.addr %s337, 16
        %s339 = scalar_lea.vmem [#allocation9], %s338
        %p340 = scmp.lt.s32.totalorder %s27, 3
        %s341 = scalar_select %p340, %s27, 3
        %s342 = smul.addr %s341, 2
        %s343 = smul.addr %s342, 8
        %s344 = scalar_lea.vmem %s0, %s343
        %p345 = scmp.lt.s32.totalorder %s27, 3
        %s346 = scalar_select %p345, %s27, 3
        %s347 = smul.addr %s346, 2
        %s348 = smul.addr %s347, 8
        %s349 = scalar_lea.vmem %s1, %s348
        %v351 = vld [vmem:[%s3] sm:$0x1]
        %v352 = vld [vmem:[%s3 + $0x1] sm:$0x1]
        %v353 = vld [vmem:[%s3 + $0x2] sm:$0x1]
        %v354 = vld [vmem:[%s3 + $0x3] sm:$0x1]
        %v355 = vld [vmem:[%s3 + $0x4] sm:$0x1]
        %v356 = vld [vmem:[%s3 + $0x5] sm:$0x1]
        %v357 = vld [vmem:[%s3 + $0x6] sm:$0x1]
        %v358 = vld [vmem:[#allocation2] sm:$0xf]
        %v359 = vld [vmem:[#allocation2 + $0xc] sm:$0xf]
        %v360 = vld [vmem:[#allocation2 + $0x18] sm:$0xf]
        %v361 = vld [vmem:[#allocation2 + $0x24] sm:$0xf]
        %v362 = vld [vmem:[#allocation2 + $0x4] sm:$0xf]
        %v363 = vld [vmem:[#allocation2 + $0x10] sm:$0xf]
        %v364 = vld [vmem:[#allocation2 + $0x1c] sm:$0xf]
        %v365 = vld [vmem:[#allocation2 + $0x28] sm:$0xf]
        %v366 = vld [vmem:[#allocation2 + $0x8] sm:$0xf]
        %v367 = vld [vmem:[#allocation2 + $0x14] sm:$0xf]
        %v368 = vld [vmem:[#allocation2 + $0x20] sm:$0xf]
        %v369 = vld [vmem:[#allocation2 + $0x2c] sm:$0xf]
        %v370 = vld [vmem:[%s344] sm:$0xff]
        %v371 = vld [vmem:[%s344 + $0x8] sm:$0xff]
        %v372 = vlaneseq
        %v373 = vand.u32 %v372, 127
        %374 = vset.pattern.permute.xlu0 0
        %375 = vperm.xlu0 %374, %v370
        %v376 = vpop.permute.xlu0 %375
        %377 = vset.pattern.permute.xlu0 0
        %378 = vperm.xlu0 %377, %v371
        %v379 = vpop.permute.xlu0 %378
        %vm380 = vcmp.eq.s32.totalorder %v373, %v376
        %vm381 = vcmp.eq.s32.totalorder %v373, %v379
        %v382 = vsel %vm380, 1, 0
        %v383 = vsel %vm381, 1, 0
        %v384 = vcvt.s32.f32 %v382
        %v385 = vcvt.s32.f32 %v383
        %v386 = vpack.c.bf16 %v385, %v384
        %v391 = vunpack.c.l.b16 %v366
        %v392 = vunpack.c.l.b16 %v367
        %v393 = vunpack.c.l.b16 %v368
        %v394 = vunpack.c.l.b16 %v369
        %v395 = vpack.c.b16 %v392, %v391
        %v396 = vpack.c.b16 %v394, %v393
        %vm399 = vcmask 261120
        %v401 = vsel %vm399, %v386, 0
        %403 = vmatprep.subr.bf16.mxu0 0
        %404 = vmatpush1.bf16.msra.mxu0 %v395
        %405 = vmatprep.subr.bf16.mxu0 0
        %406 = vmatpush1.bf16.msra.mxu0 %v396
        %407 = vmatprep.subr.bf16.mxu0 0
        %408 = vmatpush1.bf16.msra.mxu0 0
        %409 = vmatprep.subr.bf16.mxu0 0
        %410 = vmatpush1.bf16.msra.mxu0 0
        %411 = vmatprep.subr.bf16.mxu0 0
        %412 = vmatpush1.bf16.msra.mxu0 0
        %413 = vmatprep.subr.bf16.mxu0 0
        %414 = vmatpush1.bf16.msra.mxu0 0
        %415 = vmatprep.subr.bf16.mxu0 0
        %416 = vmatpush1.bf16.msra.mxu0 0
        %417 = vmatprep.subr.bf16.mxu0 0
        %418 = vmatpush1.bf16.msra.mxu0 0
        %419 = vmatprep.subr.bf16.mxu0 0
        %420 = vmatpush1.bf16.msra.mxu0 0
        %421 = vmatprep.subr.bf16.mxu0 0
        %422 = vmatpush1.bf16.msra.mxu0 0
        %423 = vmatprep.subr.bf16.mxu0 0
        %424 = vmatpush1.bf16.msra.mxu0 0
        %425 = vmatprep.subr.bf16.mxu0 0
        %426 = vmatpush1.bf16.msra.mxu0 0
        %427 = vmatprep.subr.bf16.mxu0 0
        %428 = vmatpush1.bf16.msra.mxu0 0
        %429 = vmatprep.subr.bf16.mxu0 0
        %430 = vmatpush1.bf16.msra.mxu0 0
        %431 = vmatprep.subr.bf16.mxu0 0
        %432 = vmatpush1.bf16.msra.mxu0 0
        %433 = vmatprep.subr.bf16.mxu0 0
        %434 = vmatpush1.bf16.msra.mxu0 0
        %435 = vmatprep.mubr.bf16.mxu0 0
        %436 = vmatmul.mubr.bf16.gmra.mrb[0].mxu0 %v401
        %v437 = vpop.f32.mrb[0].mxu0
        %v438 = vadd.f32 0.0, %v437
        %v439 = vpop.f32.mrb[0].mxu0
        %v440 = vpop.f32.mrb[0].mxu0
        %v441 = vadd.f32 0.0, %v440
        %v442 = vpop.f32.mrb[0].mxu0
        %443 = vdwg.mxu0
        %444 = vst.msk [vmem:[%s332] sm:$0xff] %vm399, %v438
        %445 = vst.msk [vmem:[%s332 + $0x8] sm:$0xff] %vm399, %v441
        %v446 = vld [vmem:[%s349] sm:$0xff]
        %v447 = vld [vmem:[%s349 + $0x8] sm:$0xff]
        %v448 = vpack.c.bf16 %v447, %v446
        %v449 = vpack.c.bf16 %v441, %v438
        %v454 = vunpack.c.l.b16 %v358
        %v455 = vunpack.c.l.b16 %v359
        %v456 = vunpack.c.l.b16 %v360
        %v457 = vunpack.c.l.b16 %v361
        %v458 = vpack.c.b16 %v455, %v454
        %v459 = vpack.c.b16 %v457, %v456
        %460 = vrot.lane.b32.xlu0 %v458, 96
        %v461 = vpop.permute.xlu0 %460
        %462 = vrot.lane.b32.xlu0 %v459, 96
        %v463 = vpop.permute.xlu0 %462
        %v467 = vsel %vm399, %v449, 0
        %469 = vmatprep.subr.bf16.mxu0 0
        %470 = vmatpush1.bf16.msra.mxu0 %v461
        %471 = vmatprep.subr.bf16.mxu0 0
        %472 = vmatpush1.bf16.msra.mxu0 %v463
        %473 = vmatprep.subr.bf16.mxu0 0
        %474 = vmatpush1.bf16.msra.mxu0 0
        %475 = vmatprep.subr.bf16.mxu0 0
        %476 = vmatpush1.bf16.msra.mxu0 0
        %477 = vmatprep.subr.bf16.mxu0 0
        %478 = vmatpush1.bf16.msra.mxu0 0
        %479 = vmatprep.subr.bf16.mxu0 0
        %480 = vmatpush1.bf16.msra.mxu0 0
        %481 = vmatprep.subr.bf16.mxu0 0
        %482 = vmatpush1.bf16.msra.mxu0 0
        %483 = vmatprep.subr.bf16.mxu0 0
        %484 = vmatpush1.bf16.msra.mxu0 0
        %485 = vmatprep.subr.bf16.mxu0 0
        %486 = vmatpush1.bf16.msra.mxu0 0
        %487 = vmatprep.subr.bf16.mxu0 0
        %488 = vmatpush1.bf16.msra.mxu0 0
        %489 = vmatprep.subr.bf16.mxu0 0
        %490 = vmatpush1.bf16.msra.mxu0 0
        %491 = vmatprep.subr.bf16.mxu0 0
        %492 = vmatpush1.bf16.msra.mxu0 0
        %493 = vmatprep.subr.bf16.mxu0 0
        %494 = vmatpush1.bf16.msra.mxu0 0
        %495 = vmatprep.subr.bf16.mxu0 0
        %496 = vmatpush1.bf16.msra.mxu0 0
        %497 = vmatprep.subr.bf16.mxu0 0
        %498 = vmatpush1.bf16.msra.mxu0 0
        %499 = vmatprep.subr.bf16.mxu0 0
        %500 = vmatpush1.bf16.msra.mxu0 0
        %501 = vmatprep.mubr.bf16.mxu0 0
        %502 = vmatmul.mubr.bf16.gmra.mrb[0].mxu0 %v467
        %v503 = vpop.f32.mrb[0].mxu0
        %v504 = vadd.f32 0.0, %v503
        %v505 = vpop.f32.mrb[0].mxu0
        %v506 = vpop.f32.mrb[0].mxu0
        %v507 = vadd.f32 0.0, %v506
        %v508 = vpop.f32.mrb[0].mxu0
        %509 = vdwg.mxu0
        %v513 = vsel %vm399, %v448, 0
        %515 = vmatprep.subr.bf16.mxu0 0
        %516 = vmatpush1.bf16.msra.mxu0 %v458
        %517 = vmatprep.subr.bf16.mxu0 0
        %518 = vmatpush1.bf16.msra.mxu0 %v459
        %519 = vmatprep.subr.bf16.mxu0 0
        %520 = vmatpush1.bf16.msra.mxu0 0
        %521 = vmatprep.subr.bf16.mxu0 0
        %522 = vmatpush1.bf16.msra.mxu0 0
        %523 = vmatprep.subr.bf16.mxu0 0
        %524 = vmatpush1.bf16.msra.mxu0 0
        %525 = vmatprep.subr.bf16.mxu0 0
        %526 = vmatpush1.bf16.msra.mxu0 0
        %527 = vmatprep.subr.bf16.mxu0 0
        %528 = vmatpush1.bf16.msra.mxu0 0
        %529 = vmatprep.subr.bf16.mxu0 0
        %530 = vmatpush1.bf16.msra.mxu0 0
        %531 = vmatprep.subr.bf16.mxu0 0
        %532 = vmatpush1.bf16.msra.mxu0 0
        %533 = vmatprep.subr.bf16.mxu0 0
        %534 = vmatpush1.bf16.msra.mxu0 0
        %535 = vmatprep.subr.bf16.mxu0 0
        %536 = vmatpush1.bf16.msra.mxu0 0
        %537 = vmatprep.subr.bf16.mxu0 0
        %538 = vmatpush1.bf16.msra.mxu0 0
        %539 = vmatprep.subr.bf16.mxu0 0
        %540 = vmatpush1.bf16.msra.mxu0 0
        %541 = vmatprep.subr.bf16.mxu0 0
        %542 = vmatpush1.bf16.msra.mxu0 0
        %543 = vmatprep.subr.bf16.mxu0 0
        %544 = vmatpush1.bf16.msra.mxu0 0
        %545 = vmatprep.subr.bf16.mxu0 0
        %546 = vmatpush1.bf16.msra.mxu0 0
        %547 = vmatprep.mubr.bf16.mxu0 0
        %548 = vmatmul.mubr.bf16.gmra.mrb[0].mxu0 %v513
        %v549 = vpop.f32.mrb[0].mxu0
        %v550 = vadd.f32 %v504, %v549
        %v551 = vpop.f32.mrb[0].mxu0
        %v552 = vpop.f32.mrb[0].mxu0
        %v553 = vadd.f32 %v507, %v552
        %v554 = vpop.f32.mrb[0].mxu0
        %555 = vdwg.mxu0
        %v556 = vlaneseq
        %v557 = vshrl.u32 %v556, 7
        %v558 = vsub.s32 0, %v557
        %v559 = vrot.slane %v351, %v558
        %v560 = vadd.f32 %v550, %v559
        %v561 = vadd.f32 %v553, %v559
        %v562 = vmax.f32 %v438, 0.0
        %v563 = vmax.f32 %v441, 0.0
        %v564 = vmax.f32 %v560, 0.0
        %v565 = vmax.f32 %v561, 0.0
        %v566 = vpack.c.bf16 %v565, %v564
        %v567 = vpack.c.bf16 %v563, %v562
        %568 = vrot.lane.b32.xlu0 %v458, 64
        %v569 = vpop.permute.xlu0 %568
        %570 = vrot.lane.b32.xlu0 %v459, 64
        %v571 = vpop.permute.xlu0 %570
        %v575 = vsel %vm399, %v566, 0
        %577 = vmatprep.subr.bf16.mxu0 0
        %578 = vmatpush1.bf16.msra.mxu0 %v569
        %579 = vmatprep.subr.bf16.mxu0 0
        %580 = vmatpush1.bf16.msra.mxu0 %v571
        %581 = vmatprep.subr.bf16.mxu0 0
        %582 = vmatpush1.bf16.msra.mxu0 0
        %583 = vmatprep.subr.bf16.mxu0 0
        %584 = vmatpush1.bf16.msra.mxu0 0
        %585 = vmatprep.subr.bf16.mxu0 0
        %586 = vmatpush1.bf16.msra.mxu0 0
        %587 = vmatprep.subr.bf16.mxu0 0
        %588 = vmatpush1.bf16.msra.mxu0 0
        %589 = vmatprep.subr.bf16.mxu0 0
        %590 = vmatpush1.bf16.msra.mxu0 0
        %591 = vmatprep.subr.bf16.mxu0 0
        %592 = vmatpush1.bf16.msra.mxu0 0
        %593 = vmatprep.subr.bf16.mxu0 0
        %594 = vmatpush1.bf16.msra.mxu0 0
        %595 = vmatprep.subr.bf16.mxu0 0
        %596 = vmatpush1.bf16.msra.mxu0 0
        %597 = vmatprep.subr.bf16.mxu0 0
        %598 = vmatpush1.bf16.msra.mxu0 0
        %599 = vmatprep.subr.bf16.mxu0 0
        %600 = vmatpush1.bf16.msra.mxu0 0
        %601 = vmatprep.subr.bf16.mxu0 0
        %602 = vmatpush1.bf16.msra.mxu0 0
        %603 = vmatprep.subr.bf16.mxu0 0
        %604 = vmatpush1.bf16.msra.mxu0 0
        %605 = vmatprep.subr.bf16.mxu0 0
        %606 = vmatpush1.bf16.msra.mxu0 0
        %607 = vmatprep.subr.bf16.mxu0 0
        %608 = vmatpush1.bf16.msra.mxu0 0
        %609 = vmatprep.mubr.bf16.mxu0 0
        %610 = vmatmul.mubr.bf16.gmra.mrb[0].mxu0 %v575
        %v611 = vpop.f32.mrb[0].mxu0
        %v612 = vadd.f32 0.0, %v611
        %v613 = vpop.f32.mrb[0].mxu0
        %v614 = vpop.f32.mrb[0].mxu0
        %v615 = vadd.f32 0.0, %v614
        %v616 = vpop.f32.mrb[0].mxu0
        %617 = vdwg.mxu0
        %v618 = vmul.f32 %v612, 0.17677669
        %v619 = vmul.f32 %v615, 0.17677669
        %620 = vrot.lane.b32.xlu0 %v458, 32
        %v621 = vpop.permute.xlu0 %620
        %622 = vrot.lane.b32.xlu0 %v459, 32
        %v623 = vpop.permute.xlu0 %622
        %v627 = vsel %vm399, %v567, 0
        %629 = vmatprep.subr.bf16.mxu0 0
        %630 = vmatpush1.bf16.msra.mxu0 %v621
        %631 = vmatprep.subr.bf16.mxu0 0
        %632 = vmatpush1.bf16.msra.mxu0 %v623
        %633 = vmatprep.subr.bf16.mxu0 0
        %634 = vmatpush1.bf16.msra.mxu0 0
        %635 = vmatprep.subr.bf16.mxu0 0
        %636 = vmatpush1.bf16.msra.mxu0 0
        %637 = vmatprep.subr.bf16.mxu0 0
        %638 = vmatpush1.bf16.msra.mxu0 0
        %639 = vmatprep.subr.bf16.mxu0 0
        %640 = vmatpush1.bf16.msra.mxu0 0
        %641 = vmatprep.subr.bf16.mxu0 0
        %642 = vmatpush1.bf16.msra.mxu0 0
        %643 = vmatprep.subr.bf16.mxu0 0
        %644 = vmatpush1.bf16.msra.mxu0 0
        %645 = vmatprep.subr.bf16.mxu0 0
        %646 = vmatpush1.bf16.msra.mxu0 0
        %647 = vmatprep.subr.bf16.mxu0 0
        %648 = vmatpush1.bf16.msra.mxu0 0
        %649 = vmatprep.subr.bf16.mxu0 0
        %650 = vmatpush1.bf16.msra.mxu0 0
        %651 = vmatprep.subr.bf16.mxu0 0
        %652 = vmatpush1.bf16.msra.mxu0 0
        %653 = vmatprep.subr.bf16.mxu0 0
        %654 = vmatpush1.bf16.msra.mxu0 0
        %655 = vmatprep.subr.bf16.mxu0 0
        %656 = vmatpush1.bf16.msra.mxu0 0
        %657 = vmatprep.subr.bf16.mxu0 0
        %658 = vmatpush1.bf16.msra.mxu0 0
        %659 = vmatprep.subr.bf16.mxu0 0
        %660 = vmatpush1.bf16.msra.mxu0 0
        %661 = vmatprep.mubr.bf16.mxu0 0
        %662 = vmatmul.mubr.bf16.gmra.mrb[0].mxu0 %v627
        %v663 = vpop.f32.mrb[0].mxu0
        %v664 = vadd.f32 0.0, %v663
        %v665 = vpop.f32.mrb[0].mxu0
        %v666 = vpop.f32.mrb[0].mxu0
        %v667 = vadd.f32 0.0, %v666
        %v668 = vpop.f32.mrb[0].mxu0
        %669 = vdwg.mxu0
        %v674 = vunpack.c.l.b16 %v362
        %v675 = vunpack.c.l.b16 %v363
        %v676 = vunpack.c.l.b16 %v364
        %v677 = vunpack.c.l.b16 %v365
        %v678 = vpack.c.b16 %v675, %v674
        %v679 = vpack.c.b16 %v677, %v676
        %682 = vmatprep.subr.bf16.mxu0 0
        %683 = vmatpush1.bf16.msra.mxu0 %v678
        %684 = vmatprep.subr.bf16.mxu0 0
        %685 = vmatpush1.bf16.msra.mxu0 %v679
        %686 = vmatprep.subr.bf16.mxu0 0
        %687 = vmatpush1.bf16.msra.mxu0 0
        %688 = vmatprep.subr.bf16.mxu0 0
        %689 = vmatpush1.bf16.msra.mxu0 0
        %690 = vmatprep.subr.bf16.mxu0 0
        %691 = vmatpush1.bf16.msra.mxu0 0
        %692 = vmatprep.subr.bf16.mxu0 0
        %693 = vmatpush1.bf16.msra.mxu0 0
        %694 = vmatprep.subr.bf16.mxu0 0
        %695 = vmatpush1.bf16.msra.mxu0 0
        %696 = vmatprep.subr.bf16.mxu0 0
        %697 = vmatpush1.bf16.msra.mxu0 0
        %698 = vmatprep.subr.bf16.mxu0 0
        %699 = vmatpush1.bf16.msra.mxu0 0
        %700 = vmatprep.subr.bf16.mxu0 0
        %701 = vmatpush1.bf16.msra.mxu0 0
        %702 = vmatprep.subr.bf16.mxu0 0
        %703 = vmatpush1.bf16.msra.mxu0 0
        %704 = vmatprep.subr.bf16.mxu0 0
        %705 = vmatpush1.bf16.msra.mxu0 0
        %706 = vmatprep.subr.bf16.mxu0 0
        %707 = vmatpush1.bf16.msra.mxu0 0
        %708 = vmatprep.subr.bf16.mxu0 0
        %709 = vmatpush1.bf16.msra.mxu0 0
        %710 = vmatprep.subr.bf16.mxu0 0
        %711 = vmatpush1.bf16.msra.mxu0 0
        %712 = vmatprep.subr.bf16.mxu0 0
        %713 = vmatpush1.bf16.msra.mxu0 0
        %714 = vmatprep.mubr.bf16.mxu0 0
        %715 = vmatmul.mubr.bf16.gmra.mrb[0].mxu0 %v575
        %v716 = vpop.f32.mrb[0].mxu0
        %v717 = vadd.f32 0.0, %v716
        %v718 = vpop.f32.mrb[0].mxu0
        %v719 = vpop.f32.mrb[0].mxu0
        %v720 = vadd.f32 0.0, %v719
        %v721 = vpop.f32.mrb[0].mxu0
        %722 = vdwg.mxu0
        %v723 = vpack.c.bf16 %v619, %v618
        %v724 = vpack.c.bf16 %v667, %v664
        %v726 = vsel %vm399, %v723, 0
        %v729 = vsel %vm399, %v724, 0
        %731 = vmatprep.subr.bf16.mxu0 0
        %732 = vmatpush1.bf16.xpose.msra.mxu0 %v729
        %733 = vmatprep.subr.bf16.mxu0 0
        %734 = vmatpush1.bf16.xpose.msra.mxu0 0
        %735 = vmatprep.subr.bf16.mxu0 0
        %736 = vmatpush1.bf16.xpose.msra.mxu0 0
        %737 = vmatprep.subr.bf16.mxu0 0
        %738 = vmatpush1.bf16.xpose.msra.mxu0 0
        %739 = vmatprep.subr.bf16.mxu0 0
        %740 = vmatpush1.bf16.xpose.msra.mxu0 0
        %741 = vmatprep.subr.bf16.mxu0 0
        %742 = vmatpush1.bf16.xpose.msra.mxu0 0
        %743 = vmatprep.subr.bf16.mxu0 0
        %744 = vmatpush1.bf16.xpose.msra.mxu0 0
        %745 = vmatprep.subr.bf16.mxu0 0
        %746 = vmatpush1.bf16.xpose.msra.mxu0 0
        %747 = vmatprep.subr.bf16.mxu0 0
        %748 = vmatpush1.bf16.xpose.msra.mxu0 0
        %749 = vmatprep.subr.bf16.mxu0 0
        %750 = vmatpush1.bf16.xpose.msra.mxu0 0
        %751 = vmatprep.subr.bf16.mxu0 0
        %752 = vmatpush1.bf16.xpose.msra.mxu0 0
        %753 = vmatprep.subr.bf16.mxu0 0
        %754 = vmatpush1.bf16.xpose.msra.mxu0 0
        %755 = vmatprep.subr.bf16.mxu0 0
        %756 = vmatpush1.bf16.xpose.msra.mxu0 0
        %757 = vmatprep.subr.bf16.mxu0 0
        %758 = vmatpush1.bf16.xpose.msra.mxu0 0
        %759 = vmatprep.subr.bf16.mxu0 0
        %760 = vmatpush1.bf16.xpose.msra.mxu0 0
        %761 = vmatprep.subr.bf16.mxu0 0
        %762 = vmatpush1.bf16.xpose.msra.mxu0 0
        %763 = vmatprep.mubr.bf16.mxu0 0
        %764 = vmatmul.mubr.bf16.gmra.mrb[0].mxu0 %v726
        %v765 = vpop.f32.mrb[0].mxu0
        %v766 = vadd.f32 0.0, %v765
        %v767 = vpop.f32.mrb[0].mxu0
        %v768 = vpop.f32.mrb[0].mxu0
        %v769 = vadd.f32 0.0, %v768
        %v770 = vpop.f32.mrb[0].mxu0
        %771 = vdwg.mxu0
        %v772 = vlaneseq
        %v773 = vshrl.u32 %v772, 7
        %v774 = vsub.s32 0, %v773
        %v775 = vrot.slane %v352, %v774
        %v776 = vmul.f32 %v618, %v775
        %v777 = vmul.f32 %v619, %v775
        %v778 = vsel %vm399, %v776, 0.0
        %779 = vadd.xlane.f32.xlu0 %v778
        %v780 = vpop.xlane.xlu0 %779
        %v781 = vsel %vm399, %v777, 0.0
        %782 = vadd.xlane.f32.xlu0 %v781
        %v783 = vpop.xlane.xlu0 %782
        %vm784 = vcmask 130048
        %v785 = vsel %vm784, %v766, -inf
        %786 = vmax.xlane.f32.xlu0 %v785
        %v787 = vpop.xlane.xlu0 %786
        %v788 = vsel %vm784, %v769, -inf
        %789 = vmax.xlane.f32.xlu0 %v788
        %v790 = vpop.xlane.xlu0 %789
        %v791 = vmax.f32 %v787, %v780
        %v792 = vmax.f32 %v790, %v783
        %v793 = vsub.f32 %v766, %v791
        %v794 = vsub.f32 %v769, %v792
        %v795 = vmul.f32 %v793, 1.442695
        %v796 = vpow.pop %v795
        %v797 = vmul.f32 %v794, 1.442695
        %v798 = vpow.pop %v797
        %v799 = vsub.f32 %v780, %v791
        %v800 = vsub.f32 %v783, %v792
        %v801 = vmul.f32 %v799, 1.442695
        %v802 = vpow.pop %v801
        %v803 = vmul.f32 %v800, 1.442695
        %v804 = vpow.pop %v803
        %v805 = vsel %vm784, %v796, 0.0
        %806 = vadd.xlane.f32.xlu0 %v805
        %v807 = vpop.xlane.xlu0 %806
        %v808 = vsel %vm784, %v798, 0.0
        %809 = vadd.xlane.f32.xlu0 %v808
        %v810 = vpop.xlane.xlu0 %809
        %v811 = vadd.f32 %v807, %v802
        %v812 = vadd.f32 %v810, %v804
        %v813 = vpack.c.bf16 %v798, %v796
        %v814 = vpack.c.bf16 %v720, %v717
        %v816 = vsel %vm784, %v813, 0
        %818 = vmatprep.subr.bf16.mxu0 0
        %819 = vmatpush1.bf16.msra.mxu0 %v814
        %820 = vmatprep.subr.bf16.mxu0 0
        %821 = vmatpush1.bf16.msra.mxu0 0
        %822 = vmatprep.subr.bf16.mxu0 0
        %823 = vmatpush1.bf16.msra.mxu0 0
        %824 = vmatprep.subr.bf16.mxu0 0
        %825 = vmatpush1.bf16.msra.mxu0 0
        %826 = vmatprep.subr.bf16.mxu0 0
        %827 = vmatpush1.bf16.msra.mxu0 0
        %828 = vmatprep.subr.bf16.mxu0 0
        %829 = vmatpush1.bf16.msra.mxu0 0
        %830 = vmatprep.subr.bf16.mxu0 0
        %831 = vmatpush1.bf16.msra.mxu0 0
        %832 = vmatprep.subr.bf16.mxu0 0
        %833 = vmatpush1.bf16.msra.mxu0 0
        %834 = vmatprep.subr.bf16.mxu0 0
        %835 = vmatpush1.bf16.msra.mxu0 0
        %836 = vmatprep.subr.bf16.mxu0 0
        %837 = vmatpush1.bf16.msra.mxu0 0
        %838 = vmatprep.subr.bf16.mxu0 0
        %839 = vmatpush1.bf16.msra.mxu0 0
        %840 = vmatprep.subr.bf16.mxu0 0
        %841 = vmatpush1.bf16.msra.mxu0 0
        %842 = vmatprep.subr.bf16.mxu0 0
        %843 = vmatpush1.bf16.msra.mxu0 0
        %844 = vmatprep.subr.bf16.mxu0 0
        %845 = vmatpush1.bf16.msra.mxu0 0
        %846 = vmatprep.subr.bf16.mxu0 0
        %847 = vmatpush1.bf16.msra.mxu0 0
        %848 = vmatprep.subr.bf16.mxu0 0
        %849 = vmatpush1.bf16.msra.mxu0 0
        %850 = vmatprep.mubr.bf16.mxu0 0
        %851 = vmatmul.mubr.bf16.gmra.mrb[0].mxu0 %v816
        %v852 = vpop.f32.mrb[0].mxu0
        %v853 = vadd.f32 0.0, %v852
        %v854 = vpop.f32.mrb[0].mxu0
        %v855 = vpop.f32.mrb[0].mxu0
        %v856 = vadd.f32 0.0, %v855
        %v857 = vpop.f32.mrb[0].mxu0
        %858 = vdwg.mxu0
        %v859 = vrcp.pop %v811
        %v860 = vrcp.pop %v812
        %v861 = vmul.f32 %v853, %v859
        %v862 = vmul.f32 %v856, %v860
        %v863 = vmul.f32 %v861, %v564
        %v864 = vmul.f32 %v862, %v565
        %v865 = vpack.c.bf16 %v864, %v863
        %v866 = vlaneseq
        %v867 = vshrl.u32 %v866, 7
        %v868 = vsub.s32 0, %v867
        %v869 = vrot.slane %v353, %v868
        %870 = vrot.lane.b32.xlu0 %v678, 32
        %v871 = vpop.permute.xlu0 %870
        %872 = vrot.lane.b32.xlu0 %v679, 32
        %v873 = vpop.permute.xlu0 %872
        %v877 = vsel %vm399, %v865, 0
        %879 = vmatprep.subr.bf16.mxu0 0
        %880 = vmatpush1.bf16.msra.mxu0 %v871
        %881 = vmatprep.subr.bf16.mxu0 0
        %882 = vmatpush1.bf16.msra.mxu0 %v873
        %883 = vmatprep.subr.bf16.mxu0 0
        %884 = vmatpush1.bf16.msra.mxu0 0
        %885 = vmatprep.subr.bf16.mxu0 0
        %886 = vmatpush1.bf16.msra.mxu0 0
        %887 = vmatprep.subr.bf16.mxu0 0
        %888 = vmatpush1.bf16.msra.mxu0 0
        %889 = vmatprep.subr.bf16.mxu0 0
        %890 = vmatpush1.bf16.msra.mxu0 0
        %891 = vmatprep.subr.bf16.mxu0 0
        %892 = vmatpush1.bf16.msra.mxu0 0
        %893 = vmatprep.subr.bf16.mxu0 0
        %894 = vmatpush1.bf16.msra.mxu0 0
        %895 = vmatprep.subr.bf16.mxu0 0
        %896 = vmatpush1.bf16.msra.mxu0 0
        %897 = vmatprep.subr.bf16.mxu0 0
        %898 = vmatpush1.bf16.msra.mxu0 0
        %899 = vmatprep.subr.bf16.mxu0 0
        %900 = vmatpush1.bf16.msra.mxu0 0
        %901 = vmatprep.subr.bf16.mxu0 0
        %902 = vmatpush1.bf16.msra.mxu0 0
        %903 = vmatprep.subr.bf16.mxu0 0
        %904 = vmatpush1.bf16.msra.mxu0 0
        %905 = vmatprep.subr.bf16.mxu0 0
        %906 = vmatpush1.bf16.msra.mxu0 0
        %907 = vmatprep.subr.bf16.mxu0 0
        %908 = vmatpush1.bf16.msra.mxu0 0
        %909 = vmatprep.subr.bf16.mxu0 0
        %910 = vmatpush1.bf16.msra.mxu0 0
        %911 = vmatprep.mubr.bf16.mxu0 0
        %912 = vmatmul.mubr.bf16.gmra.mrb[0].mxu0 %v877
        %v913 = vpop.f32.mrb[0].mxu0
        %v914 = vadd.f32 %v869, %v913
        %v915 = vpop.f32.mrb[0].mxu0
        %v916 = vpop.f32.mrb[0].mxu0
        %v917 = vadd.f32 %v869, %v916
        %v918 = vpop.f32.mrb[0].mxu0
        %919 = vdwg.mxu0
        %v920 = vmax.f32 %v914, 0.0
        %v921 = vmax.f32 %v917, 0.0
        %v922 = vsub.f32 %v564, %v861
        %v923 = vsub.f32 %v565, %v862
        %v924 = vpack.c.bf16 %v923, %v922
        %925 = vrot.lane.b32.xlu0 %v678, 16
        %v926 = vpop.permute.xlu0 %925
        %927 = vrot.lane.b32.xlu0 %v679, 16
        %v928 = vpop.permute.xlu0 %927
        %932 = vrot.lane.b32.xlu0 %v869, 112
        %v933 = vpop.permute.xlu0 %932
        %v936 = vsel %vm399, %v924, 0
        %938 = vmatprep.subr.bf16.mxu0 0
        %939 = vmatpush1.bf16.msra.mxu0 %v926
        %940 = vmatprep.subr.bf16.mxu0 0
        %941 = vmatpush1.bf16.msra.mxu0 %v928
        %942 = vmatprep.subr.bf16.mxu0 0
        %943 = vmatpush1.bf16.msra.mxu0 0
        %944 = vmatprep.subr.bf16.mxu0 0
        %945 = vmatpush1.bf16.msra.mxu0 0
        %946 = vmatprep.subr.bf16.mxu0 0
        %947 = vmatpush1.bf16.msra.mxu0 0
        %948 = vmatprep.subr.bf16.mxu0 0
        %949 = vmatpush1.bf16.msra.mxu0 0
        %950 = vmatprep.subr.bf16.mxu0 0
        %951 = vmatpush1.bf16.msra.mxu0 0
        %952 = vmatprep.subr.bf16.mxu0 0
        %953 = vmatpush1.bf16.msra.mxu0 0
        %954 = vmatprep.subr.bf16.mxu0 0
        %955 = vmatpush1.bf16.msra.mxu0 0
        %956 = vmatprep.subr.bf16.mxu0 0
        %957 = vmatpush1.bf16.msra.mxu0 0
        %958 = vmatprep.subr.bf16.mxu0 0
        %959 = vmatpush1.bf16.msra.mxu0 0
        %960 = vmatprep.subr.bf16.mxu0 0
        %961 = vmatpush1.bf16.msra.mxu0 0
        %962 = vmatprep.subr.bf16.mxu0 0
        %963 = vmatpush1.bf16.msra.mxu0 0
        %964 = vmatprep.subr.bf16.mxu0 0
        %965 = vmatpush1.bf16.msra.mxu0 0
        %966 = vmatprep.subr.bf16.mxu0 0
        %967 = vmatpush1.bf16.msra.mxu0 0
        %968 = vmatprep.subr.bf16.mxu0 0
        %969 = vmatpush1.bf16.msra.mxu0 0
        %970 = vmatprep.mubr.bf16.mxu0 0
        %971 = vmatmul.mubr.bf16.gmra.mrb[0].mxu0 %v936
        %v972 = vpop.f32.mrb[0].mxu0
        %v973 = vadd.f32 %v933, %v972
        %v974 = vpop.f32.mrb[0].mxu0
        %v975 = vpop.f32.mrb[0].mxu0
        %v976 = vadd.f32 %v933, %v975
        %v977 = vpop.f32.mrb[0].mxu0
        %978 = vdwg.mxu0
        %v979 = vmax.f32 %v973, 0.0
        %v980 = vmax.f32 %v976, 0.0
        %983 = vrot.lane.b32.xlu0 %v979, 16
        %v984 = vpop.permute.xlu0 %983
        %985 = vrot.lane.b32.xlu0 %v980, 16
        %v986 = vpop.permute.xlu0 %985
        %v989 = vsel %vm784, %v920, %v984
        %v990 = vsel %vm784, %v921, %v986
        %v991 = vpack.c.bf16 %v990, %v989
        %992 = vrot.lane.b32.xlu0 %v678, 96
        %v993 = vpop.permute.xlu0 %992
        %994 = vrot.lane.b32.xlu0 %v679, 96
        %v995 = vpop.permute.xlu0 %994
        %998 = vmatprep.subr.bf16.mxu0 0
        %999 = vmatpush1.bf16.msra.mxu0 %v993
        %1000 = vmatprep.subr.bf16.mxu0 0
        %1001 = vmatpush1.bf16.msra.mxu0 %v995
        %1002 = vmatprep.subr.bf16.mxu0 0
        %1003 = vmatpush1.bf16.msra.mxu0 0
        %1004 = vmatprep.subr.bf16.mxu0 0
        %1005 = vmatpush1.bf16.msra.mxu0 0
        %1006 = vmatprep.subr.bf16.mxu0 0
        %1007 = vmatpush1.bf16.msra.mxu0 0
        %1008 = vmatprep.subr.bf16.mxu0 0
        %1009 = vmatpush1.bf16.msra.mxu0 0
        %1010 = vmatprep.subr.bf16.mxu0 0
        %1011 = vmatpush1.bf16.msra.mxu0 0
        %1012 = vmatprep.subr.bf16.mxu0 0
        %1013 = vmatpush1.bf16.msra.mxu0 0
        %1014 = vmatprep.subr.bf16.mxu0 0
        %1015 = vmatpush1.bf16.msra.mxu0 0
        %1016 = vmatprep.subr.bf16.mxu0 0
        %1017 = vmatpush1.bf16.msra.mxu0 0
        %1018 = vmatprep.subr.bf16.mxu0 0
        %1019 = vmatpush1.bf16.msra.mxu0 0
        %1020 = vmatprep.subr.bf16.mxu0 0
        %1021 = vmatpush1.bf16.msra.mxu0 0
        %1022 = vmatprep.subr.bf16.mxu0 0
        %1023 = vmatpush1.bf16.msra.mxu0 0
        %1024 = vmatprep.subr.bf16.mxu0 0
        %1025 = vmatpush1.bf16.msra.mxu0 0
        %1026 = vmatprep.subr.bf16.mxu0 0
        %1027 = vmatpush1.bf16.msra.mxu0 0
        %1028 = vmatprep.subr.bf16.mxu0 0
        %1029 = vmatpush1.bf16.msra.mxu0 0
        %1030 = vmatprep.mubr.bf16.mxu0 0
        %1031 = vmatmul.mubr.bf16.gmra.mrb[0].mxu0 %v575
        %v1032 = vpop.f32.mrb[0].mxu0
        %v1033 = vadd.f32 0.0, %v1032
        %v1034 = vpop.f32.mrb[0].mxu0
        %v1035 = vpop.f32.mrb[0].mxu0
        %v1036 = vadd.f32 0.0, %v1035
        %v1037 = vpop.f32.mrb[0].mxu0
        %1038 = vdwg.mxu0
        %1039 = vrot.lane.b32.xlu0 %v678, 64
        %v1040 = vpop.permute.xlu0 %1039
        %1041 = vrot.lane.b32.xlu0 %v679, 64
        %v1042 = vpop.permute.xlu0 %1041
        %v1046 = vsel %vm399, %v991, 0
        %1048 = vmatprep.subr.bf16.mxu0 0
        %1049 = vmatpush1.bf16.msra.mxu0 %v1040
        %1050 = vmatprep.subr.bf16.mxu0 0
        %1051 = vmatpush1.bf16.msra.mxu0 %v1042
        %1052 = vmatprep.subr.bf16.mxu0 0
        %1053 = vmatpush1.bf16.msra.mxu0 0
        %1054 = vmatprep.subr.bf16.mxu0 0
        %1055 = vmatpush1.bf16.msra.mxu0 0
        %1056 = vmatprep.subr.bf16.mxu0 0
        %1057 = vmatpush1.bf16.msra.mxu0 0
        %1058 = vmatprep.subr.bf16.mxu0 0
        %1059 = vmatpush1.bf16.msra.mxu0 0
        %1060 = vmatprep.subr.bf16.mxu0 0
        %1061 = vmatpush1.bf16.msra.mxu0 0
        %1062 = vmatprep.subr.bf16.mxu0 0
        %1063 = vmatpush1.bf16.msra.mxu0 0
        %1064 = vmatprep.subr.bf16.mxu0 0
        %1065 = vmatpush1.bf16.msra.mxu0 0
        %1066 = vmatprep.subr.bf16.mxu0 0
        %1067 = vmatpush1.bf16.msra.mxu0 0
        %1068 = vmatprep.subr.bf16.mxu0 0
        %1069 = vmatpush1.bf16.msra.mxu0 0
        %1070 = vmatprep.subr.bf16.mxu0 0
        %1071 = vmatpush1.bf16.msra.mxu0 0
        %1072 = vmatprep.subr.bf16.mxu0 0
        %1073 = vmatpush1.bf16.msra.mxu0 0
        %1074 = vmatprep.subr.bf16.mxu0 0
        %1075 = vmatpush1.bf16.msra.mxu0 0
        %1076 = vmatprep.subr.bf16.mxu0 0
        %1077 = vmatpush1.bf16.msra.mxu0 0
        %1078 = vmatprep.subr.bf16.mxu0 0
        %1079 = vmatpush1.bf16.msra.mxu0 0
        %1080 = vmatprep.mubr.bf16.mxu0 0
        %1081 = vmatmul.mubr.bf16.gmra.mrb[0].mxu0 %v1046
        %v1082 = vpop.f32.mrb[0].mxu0
        %v1083 = vadd.f32 %v1033, %v1082
        %v1084 = vpop.f32.mrb[0].mxu0
        %v1085 = vpop.f32.mrb[0].mxu0
        %v1086 = vadd.f32 %v1036, %v1085
        %v1087 = vpop.f32.mrb[0].mxu0
        %1088 = vdwg.mxu0
        %v1089 = vlaneseq
        %v1090 = vshrl.u32 %v1089, 7
        %v1091 = vsub.s32 0, %v1090
        %v1092 = vrot.slane %v354, %v1091
        %v1093 = vadd.f32 %v1083, %v1092
        %v1094 = vadd.f32 %v1086, %v1092
        %v1095 = vld [vmem:[#allocation5] sm:$0xff]
        %v1096 = vld [vmem:[#allocation5 + $0x8] sm:$0xff]
        %v1097 = vld [vmem:[#allocation5 + $0x10] sm:$0xff]
        %v1098 = vld [vmem:[#allocation5 + $0x18] sm:$0xff]
        %v1099 = vld [vmem:[#allocation5 + $0x20] sm:$0xff]
        %v1100 = vld [vmem:[#allocation5 + $0x28] sm:$0xff]
        %v1101 = vld [vmem:[#allocation5 + $0x30] sm:$0xff]
        %v1102 = vld [vmem:[#allocation5 + $0x38] sm:$0xff]
        %v1103 = vld [vmem:[#allocation5 + $0x40] sm:$0xff]
        %v1104 = vld [vmem:[#allocation5 + $0x48] sm:$0xff]
        %v1105 = vld [vmem:[#allocation5 + $0x50] sm:$0xff]
        %v1106 = vld [vmem:[#allocation5 + $0x58] sm:$0xff]
        %v1107 = vld [vmem:[#allocation5 + $0x60] sm:$0xff]
        %v1108 = vld [vmem:[#allocation5 + $0x68] sm:$0xff]
        %v1109 = vld [vmem:[#allocation5 + $0x70] sm:$0xff]
        %v1110 = vld [vmem:[#allocation5 + $0x78] sm:$0xff]
        %v1111 = vld [vmem:[#allocation5 + $0x80] sm:$0xff]
        %v1112 = vld [vmem:[#allocation5 + $0x88] sm:$0xff]
        %v1113 = vld [vmem:[#allocation5 + $0x90] sm:$0xff]
        %v1114 = vld [vmem:[#allocation5 + $0x98] sm:$0xff]
        %v1115 = vld [vmem:[#allocation5 + $0xa0] sm:$0xff]
        %v1116 = vld [vmem:[#allocation5 + $0xa8] sm:$0xff]
        %v1117 = vld [vmem:[#allocation5 + $0xb0] sm:$0xff]
        %v1118 = vld [vmem:[#allocation5 + $0xb8] sm:$0xff]
        %v1119 = vld [vmem:[#allocation5 + $0xc0] sm:$0xff]
        %v1120 = vld [vmem:[#allocation5 + $0xc8] sm:$0xff]
        %v1121 = vld [vmem:[#allocation5 + $0xd0] sm:$0xff]
        %v1122 = vld [vmem:[#allocation5 + $0xd8] sm:$0xff]
        %v1123 = vld [vmem:[#allocation5 + $0xe0] sm:$0xff]
        %v1124 = vld [vmem:[#allocation5 + $0xe8] sm:$0xff]
        %v1125 = vld [vmem:[#allocation5 + $0xf0] sm:$0xff]
        %v1126 = vld [vmem:[#allocation5 + $0xf8] sm:$0xff]
        %v1127 = vpack.c.bf16 %v1094, %v1093
        %v1128 = vld [vmem:[#allocation7] sm:$0xff]
        %v1130 = vlaneseq
        %v1131 = vshrl.u32 %v1130, 7
        %v1132 = vsub.s32 0, %v1131
        %v1133 = vrot.slane %v1128, %v1132
        %v1134 = vlaneseq
        %v1135 = vshrl.u32 %v1134, 7
        %v1136 = vsub.s32 1, %v1135
        %v1137 = vrot.slane %v1128, %v1136
        %v1138 = vlaneseq
        %v1139 = vshrl.u32 %v1138, 7
        %v1140 = vsub.s32 2, %v1139
        %v1141 = vrot.slane %v1128, %v1140
        %v1142 = vlaneseq
        %v1143 = vshrl.u32 %v1142, 7
        %v1144 = vsub.s32 3, %v1143
        %v1145 = vrot.slane %v1128, %v1144
        %v1146 = vlaneseq
        %v1147 = vshrl.u32 %v1146, 7
        %v1148 = vsub.s32 4, %v1147
        %v1149 = vrot.slane %v1128, %v1148
        %v1150 = vlaneseq
        %v1151 = vshrl.u32 %v1150, 7
        %v1152 = vsub.s32 5, %v1151
        %v1153 = vrot.slane %v1128, %v1152
        %v1154 = vlaneseq
        %v1155 = vshrl.u32 %v1154, 7
        %v1156 = vsub.s32 6, %v1155
        %v1157 = vrot.slane %v1128, %v1156
        %v1158 = vlaneseq
        %v1159 = vshrl.u32 %v1158, 7
        %v1160 = vsub.s32 7, %v1159
        %v1161 = vrot.slane %v1128, %v1160
        %v1186 = vunpack.c.l.b16 %v1095
        %v1187 = vunpack.c.h.b16 %v1095
        %v1188 = vunpack.c.l.b16 %v1096
        %v1189 = vunpack.c.h.b16 %v1096
        %v1190 = vunpack.c.l.b16 %v1097
        %v1191 = vunpack.c.h.b16 %v1097
        %v1192 = vunpack.c.l.b16 %v1098
        %v1193 = vunpack.c.h.b16 %v1098
        %v1194 = vunpack.c.l.b16 %v1099
        %v1195 = vunpack.c.h.b16 %v1099
        %v1196 = vunpack.c.l.b16 %v1100
        %v1197 = vunpack.c.h.b16 %v1100
        %v1198 = vunpack.c.l.b16 %v1101
        %v1199 = vunpack.c.h.b16 %v1101
        %v1200 = vunpack.c.l.b16 %v1102
        %v1201 = vunpack.c.h.b16 %v1102
        %v1202 = vunpack.c.l.b16 %v1103
        %v1203 = vunpack.c.h.b16 %v1103
        %v1204 = vunpack.c.l.b16 %v1104
        %v1205 = vunpack.c.h.b16 %v1104
        %v1206 = vunpack.c.l.b16 %v1105
        %v1207 = vunpack.c.h.b16 %v1105
        %v1208 = vunpack.c.l.b16 %v1106
        %v1209 = vunpack.c.h.b16 %v1106
        %v1210 = vunpack.c.l.b16 %v1107
        %v1211 = vunpack.c.h.b16 %v1107
        %v1212 = vunpack.c.l.b16 %v1108
        %v1213 = vunpack.c.h.b16 %v1108
        %v1214 = vunpack.c.l.b16 %v1109
        %v1215 = vunpack.c.h.b16 %v1109
        %v1216 = vunpack.c.l.b16 %v1110
        %v1217 = vunpack.c.h.b16 %v1110
        %v1218 = vpack.c.b16 %v1194, %v1186
        %v1219 = vpack.c.b16 %v1195, %v1187
        %v1220 = vpack.c.b16 %v1196, %v1188
        %v1221 = vpack.c.b16 %v1197, %v1189
        %v1222 = vpack.c.b16 %v1198, %v1190
        %v1223 = vpack.c.b16 %v1199, %v1191
        %v1224 = vpack.c.b16 %v1200, %v1192
        %v1225 = vpack.c.b16 %v1201, %v1193
        %v1226 = vpack.c.b16 %v1210, %v1202
        %v1227 = vpack.c.b16 %v1211, %v1203
        %v1228 = vpack.c.b16 %v1212, %v1204
        %v1229 = vpack.c.b16 %v1213, %v1205
        %v1230 = vpack.c.b16 %v1214, %v1206
        %v1231 = vpack.c.b16 %v1215, %v1207
        %v1232 = vpack.c.b16 %v1216, %v1208
        %v1233 = vpack.c.b16 %v1217, %v1209
        %v1251 = vsel %vm399, %v1127, 0
        %1253 = vmatprep.subr.bf16.mxu0 %v1219
        %1254 = vmatpush1.bf16.msra.mxu0 %v1218
        %1255 = vmatprep.subr.bf16.mxu0 %v1227
        %1256 = vmatpush1.bf16.msra.mxu0 %v1226
        %1257 = vmatprep.subr.bf16.mxu0 0
        %1258 = vmatpush1.bf16.msra.mxu0 0
        %1259 = vmatprep.subr.bf16.mxu0 0
        %1260 = vmatpush1.bf16.msra.mxu0 0
        %1261 = vmatprep.subr.bf16.mxu0 0
        %1262 = vmatpush1.bf16.msra.mxu0 0
        %1263 = vmatprep.subr.bf16.mxu0 0
        %1264 = vmatpush1.bf16.msra.mxu0 0
        %1265 = vmatprep.subr.bf16.mxu0 0
        %1266 = vmatpush1.bf16.msra.mxu0 0
        %1267 = vmatprep.subr.bf16.mxu0 0
        %1268 = vmatpush1.bf16.msra.mxu0 0
        %1269 = vmatprep.subr.bf16.mxu0 0
        %1270 = vmatpush1.bf16.msra.mxu0 0
        %1271 = vmatprep.subr.bf16.mxu0 0
        %1272 = vmatpush1.bf16.msra.mxu0 0
        %1273 = vmatprep.subr.bf16.mxu0 0
        %1274 = vmatpush1.bf16.msra.mxu0 0
        %1275 = vmatprep.subr.bf16.mxu0 0
        %1276 = vmatpush1.bf16.msra.mxu0 0
        %1277 = vmatprep.subr.bf16.mxu0 0
        %1278 = vmatpush1.bf16.msra.mxu0 0
        %1279 = vmatprep.subr.bf16.mxu0 0
        %1280 = vmatpush1.bf16.msra.mxu0 0
        %1281 = vmatprep.subr.bf16.mxu0 0
        %1282 = vmatpush1.bf16.msra.mxu0 0
        %1283 = vmatprep.subr.bf16.mxu0 0
        %1284 = vmatpush1.bf16.msra.mxu0 0
        %1285 = vmatprep.mubr.bf16.mxu0 0
        %1286 = vmatmul.mubr.bf16.gmra.mrb[0].mxu0 %v1251
        %v1287 = vpop.f32.mrb[0].mxu0
        %v1288 = vadd.f32 %v1133, %v1287
        %v1289 = vpop.f32.mrb[0].mxu0
        %v1290 = vadd.f32 %v1137, %v1289
        %v1291 = vpop.f32.mrb[0].mxu0
        %v1292 = vadd.f32 %v1133, %v1291
        %v1293 = vpop.f32.mrb[0].mxu0
        %v1294 = vadd.f32 %v1137, %v1293
        %1295 = vdwg.mxu0
        %1296 = vmatprep.subr.bf16.mxu0 %v1221
        %1297 = vmatpush1.bf16.msra.mxu0 %v1220
        %1298 = vmatprep.subr.bf16.mxu0 %v1229
        %1299 = vmatpush1.bf16.msra.mxu0 %v1228
        %1300 = vmatprep.subr.bf16.mxu0 0
        %1301 = vmatpush1.bf16.msra.mxu0 0
        %1302 = vmatprep.subr.bf16.mxu0 0
        %1303 = vmatpush1.bf16.msra.mxu0 0
        %1304 = vmatprep.subr.bf16.mxu0 0
        %1305 = vmatpush1.bf16.msra.mxu0 0
        %1306 = vmatprep.subr.bf16.mxu0 0
        %1307 = vmatpush1.bf16.msra.mxu0 0
        %1308 = vmatprep.subr.bf16.mxu0 0
        %1309 = vmatpush1.bf16.msra.mxu0 0
        %1310 = vmatprep.subr.bf16.mxu0 0
        %1311 = vmatpush1.bf16.msra.mxu0 0
        %1312 = vmatprep.subr.bf16.mxu0 0
        %1313 = vmatpush1.bf16.msra.mxu0 0
        %1314 = vmatprep.subr.bf16.mxu0 0
        %1315 = vmatpush1.bf16.msra.mxu0 0
        %1316 = vmatprep.subr.bf16.mxu0 0
        %1317 = vmatpush1.bf16.msra.mxu0 0
        %1318 = vmatprep.subr.bf16.mxu0 0
        %1319 = vmatpush1.bf16.msra.mxu0 0
        %1320 = vmatprep.subr.bf16.mxu0 0
        %1321 = vmatpush1.bf16.msra.mxu0 0
        %1322 = vmatprep.subr.bf16.mxu0 0
        %1323 = vmatpush1.bf16.msra.mxu0 0
        %1324 = vmatprep.subr.bf16.mxu0 0
        %1325 = vmatpush1.bf16.msra.mxu0 0
        %1326 = vmatprep.subr.bf16.mxu0 0
        %1327 = vmatpush1.bf16.msra.mxu0 0
        %1328 = vmatprep.mubr.bf16.mxu0 0
        %1329 = vmatmul.mubr.bf16.gmra.mrb[0].mxu0 %v1251
        %v1330 = vpop.f32.mrb[0].mxu0
        %v1331 = vadd.f32 %v1141, %v1330
        %v1332 = vpop.f32.mrb[0].mxu0
        %v1333 = vadd.f32 %v1145, %v1332
        %v1334 = vpop.f32.mrb[0].mxu0
        %v1335 = vadd.f32 %v1141, %v1334
        %v1336 = vpop.f32.mrb[0].mxu0
        %v1337 = vadd.f32 %v1145, %v1336
        %1338 = vdwg.mxu0
        %1339 = vmatprep.subr.bf16.mxu0 %v1223
        %1340 = vmatpush1.bf16.msra.mxu0 %v1222
        %1341 = vmatprep.subr.bf16.mxu0 %v1231
        %1342 = vmatpush1.bf16.msra.mxu0 %v1230
        %1343 = vmatprep.subr.bf16.mxu0 0
        %1344 = vmatpush1.bf16.msra.mxu0 0
        %1345 = vmatprep.subr.bf16.mxu0 0
        %1346 = vmatpush1.bf16.msra.mxu0 0
        %1347 = vmatprep.subr.bf16.mxu0 0
        %1348 = vmatpush1.bf16.msra.mxu0 0
        %1349 = vmatprep.subr.bf16.mxu0 0
        %1350 = vmatpush1.bf16.msra.mxu0 0
        %1351 = vmatprep.subr.bf16.mxu0 0
        %1352 = vmatpush1.bf16.msra.mxu0 0
        %1353 = vmatprep.subr.bf16.mxu0 0
        %1354 = vmatpush1.bf16.msra.mxu0 0
        %1355 = vmatprep.subr.bf16.mxu0 0
        %1356 = vmatpush1.bf16.msra.mxu0 0
        %1357 = vmatprep.subr.bf16.mxu0 0
        %1358 = vmatpush1.bf16.msra.mxu0 0
        %1359 = vmatprep.subr.bf16.mxu0 0
        %1360 = vmatpush1.bf16.msra.mxu0 0
        %1361 = vmatprep.subr.bf16.mxu0 0
        %1362 = vmatpush1.bf16.msra.mxu0 0
        %1363 = vmatprep.subr.bf16.mxu0 0
        %1364 = vmatpush1.bf16.msra.mxu0 0
        %1365 = vmatprep.subr.bf16.mxu0 0
        %1366 = vmatpush1.bf16.msra.mxu0 0
        %1367 = vmatprep.subr.bf16.mxu0 0
        %1368 = vmatpush1.bf16.msra.mxu0 0
        %1369 = vmatprep.subr.bf16.mxu0 0
        %1370 = vmatpush1.bf16.msra.mxu0 0
        %1371 = vmatprep.mubr.bf16.mxu0 0
        %1372 = vmatmul.mubr.bf16.gmra.mrb[0].mxu0 %v1251
        %v1373 = vpop.f32.mrb[0].mxu0
        %v1374 = vadd.f32 %v1149, %v1373
        %v1375 = vpop.f32.mrb[0].mxu0
        %v1376 = vadd.f32 %v1153, %v1375
        %v1377 = vpop.f32.mrb[0].mxu0
        %v1378 = vadd.f32 %v1149, %v1377
        %v1379 = vpop.f32.mrb[0].mxu0
        %v1380 = vadd.f32 %v1153, %v1379
        %1381 = vdwg.mxu0
        %1382 = vmatprep.subr.bf16.mxu0 %v1225
        %1383 = vmatpush1.bf16.msra.mxu0 %v1224
        %1384 = vmatprep.subr.bf16.mxu0 %v1233
        %1385 = vmatpush1.bf16.msra.mxu0 %v1232
        %1386 = vmatprep.subr.bf16.mxu0 0
        %1387 = vmatpush1.bf16.msra.mxu0 0
        %1388 = vmatprep.subr.bf16.mxu0 0
        %1389 = vmatpush1.bf16.msra.mxu0 0
        %1390 = vmatprep.subr.bf16.mxu0 0
        %1391 = vmatpush1.bf16.msra.mxu0 0
        %1392 = vmatprep.subr.bf16.mxu0 0
        %1393 = vmatpush1.bf16.msra.mxu0 0
        %1394 = vmatprep.subr.bf16.mxu0 0
        %1395 = vmatpush1.bf16.msra.mxu0 0
        %1396 = vmatprep.subr.bf16.mxu0 0
        %1397 = vmatpush1.bf16.msra.mxu0 0
        %1398 = vmatprep.subr.bf16.mxu0 0
        %1399 = vmatpush1.bf16.msra.mxu0 0
        %1400 = vmatprep.subr.bf16.mxu0 0
        %1401 = vmatpush1.bf16.msra.mxu0 0
        %1402 = vmatprep.subr.bf16.mxu0 0
        %1403 = vmatpush1.bf16.msra.mxu0 0
        %1404 = vmatprep.subr.bf16.mxu0 0
        %1405 = vmatpush1.bf16.msra.mxu0 0
        %1406 = vmatprep.subr.bf16.mxu0 0
        %1407 = vmatpush1.bf16.msra.mxu0 0
        %1408 = vmatprep.subr.bf16.mxu0 0
        %1409 = vmatpush1.bf16.msra.mxu0 0
        %1410 = vmatprep.subr.bf16.mxu0 0
        %1411 = vmatpush1.bf16.msra.mxu0 0
        %1412 = vmatprep.subr.bf16.mxu0 0
        %1413 = vmatpush1.bf16.msra.mxu0 0
        %1414 = vmatprep.mubr.bf16.mxu0 0
        %1415 = vmatmul.mubr.bf16.gmra.mrb[0].mxu0 %v1251
        %v1416 = vpop.f32.mrb[0].mxu0
        %v1417 = vadd.f32 %v1157, %v1416
        %v1418 = vpop.f32.mrb[0].mxu0
        %v1419 = vadd.f32 %v1161, %v1418
        %v1420 = vpop.f32.mrb[0].mxu0
        %v1421 = vadd.f32 %v1157, %v1420
        %v1422 = vpop.f32.mrb[0].mxu0
        %v1423 = vadd.f32 %v1161, %v1422
        %1424 = vdwg.mxu0
        %v1425 = vmax.f32 %v1288, 0.0
        %v1426 = vmax.f32 %v1290, 0.0
        %v1427 = vmax.f32 %v1331, 0.0
        %v1428 = vmax.f32 %v1333, 0.0
        %v1429 = vmax.f32 %v1374, 0.0
        %v1430 = vmax.f32 %v1376, 0.0
        %v1431 = vmax.f32 %v1417, 0.0
        %v1432 = vmax.f32 %v1419, 0.0
        %v1433 = vmax.f32 %v1292, 0.0
        %v1434 = vmax.f32 %v1294, 0.0
        %v1435 = vmax.f32 %v1335, 0.0
        %v1436 = vmax.f32 %v1337, 0.0
        %v1437 = vmax.f32 %v1378, 0.0
        %v1438 = vmax.f32 %v1380, 0.0
        %v1439 = vmax.f32 %v1421, 0.0
        %v1440 = vmax.f32 %v1423, 0.0
        %v1441 = vpack.c.bf16 %v1433, %v1425
        %v1442 = vpack.c.bf16 %v1434, %v1426
        %v1443 = vpack.c.bf16 %v1435, %v1427
        %v1444 = vpack.c.bf16 %v1436, %v1428
        %v1445 = vpack.c.bf16 %v1437, %v1429
        %v1446 = vpack.c.bf16 %v1438, %v1430
        %v1447 = vpack.c.bf16 %v1439, %v1431
        %v1448 = vpack.c.bf16 %v1440, %v1432
        %v1449 = vlaneseq
        %v1450 = vshrl.u32 %v1449, 7
        %v1451 = vsub.s32 0, %v1450
        %v1452 = vrot.slane %v355, %v1451
        %v1469 = vunpack.c.l.b16 %v1111
        %v1470 = vunpack.c.h.b16 %v1111
        %v1471 = vunpack.c.l.b16 %v1112
        %v1472 = vunpack.c.h.b16 %v1112
        %v1473 = vunpack.c.l.b16 %v1113
        %v1474 = vunpack.c.h.b16 %v1113
        %v1475 = vunpack.c.l.b16 %v1114
        %v1476 = vunpack.c.h.b16 %v1114
        %v1477 = vunpack.c.l.b16 %v1115
        %v1478 = vunpack.c.h.b16 %v1115
        %v1479 = vunpack.c.l.b16 %v1116
        %v1480 = vunpack.c.h.b16 %v1116
        %v1481 = vunpack.c.l.b16 %v1117
        %v1482 = vunpack.c.h.b16 %v1117
        %v1483 = vunpack.c.l.b16 %v1118
        %v1484 = vunpack.c.h.b16 %v1118
        %v1485 = vunpack.c.l.b16 %v1119
        %v1486 = vunpack.c.h.b16 %v1119
        %v1487 = vunpack.c.l.b16 %v1120
        %v1488 = vunpack.c.h.b16 %v1120
        %v1489 = vunpack.c.l.b16 %v1121
        %v1490 = vunpack.c.h.b16 %v1121
        %v1491 = vunpack.c.l.b16 %v1122
        %v1492 = vunpack.c.h.b16 %v1122
        %v1493 = vunpack.c.l.b16 %v1123
        %v1494 = vunpack.c.h.b16 %v1123
        %v1495 = vunpack.c.l.b16 %v1124
        %v1496 = vunpack.c.h.b16 %v1124
        %v1497 = vunpack.c.l.b16 %v1125
        %v1498 = vunpack.c.h.b16 %v1125
        %v1499 = vunpack.c.l.b16 %v1126
        %v1500 = vunpack.c.h.b16 %v1126
        %v1501 = vpack.c.b16 %v1477, %v1469
        %v1502 = vpack.c.b16 %v1478, %v1470
        %v1503 = vpack.c.b16 %v1479, %v1471
        %v1504 = vpack.c.b16 %v1480, %v1472
        %v1505 = vpack.c.b16 %v1481, %v1473
        %v1506 = vpack.c.b16 %v1482, %v1474
        %v1507 = vpack.c.b16 %v1483, %v1475
        %v1508 = vpack.c.b16 %v1484, %v1476
        %v1509 = vpack.c.b16 %v1493, %v1485
        %v1510 = vpack.c.b16 %v1494, %v1486
        %v1511 = vpack.c.b16 %v1495, %v1487
        %v1512 = vpack.c.b16 %v1496, %v1488
        %v1513 = vpack.c.b16 %v1497, %v1489
        %v1514 = vpack.c.b16 %v1498, %v1490
        %v1515 = vpack.c.b16 %v1499, %v1491
        %v1516 = vpack.c.b16 %v1500, %v1492
        %1533 = vmatprep.subr.bf16.mxu0 %v1502
        %1534 = vmatpush1.bf16.xpose.msra.mxu0 %v1501
        %1535 = vmatprep.subr.bf16.mxu0 %v1510
        %1536 = vmatpush1.bf16.xpose.msra.mxu0 %v1509
        %1537 = vmatprep.subr.bf16.mxu0 0
        %1538 = vmatpush1.bf16.xpose.msra.mxu0 0
        %1539 = vmatprep.subr.bf16.mxu0 0
        %1540 = vmatpush1.bf16.xpose.msra.mxu0 0
        %1541 = vmatprep.subr.bf16.mxu0 0
        %1542 = vmatpush1.bf16.xpose.msra.mxu0 0
        %1543 = vmatprep.subr.bf16.mxu0 0
        %1544 = vmatpush1.bf16.xpose.msra.mxu0 0
        %1545 = vmatprep.subr.bf16.mxu0 0
        %1546 = vmatpush1.bf16.xpose.msra.mxu0 0
        %1547 = vmatprep.subr.bf16.mxu0 0
        %1548 = vmatpush1.bf16.xpose.msra.mxu0 0
        %1549 = vmatprep.subr.bf16.mxu0 0
        %1550 = vmatpush1.bf16.xpose.msra.mxu0 0
        %1551 = vmatprep.subr.bf16.mxu0 0
        %1552 = vmatpush1.bf16.xpose.msra.mxu0 0
        %1553 = vmatprep.subr.bf16.mxu0 0
        %1554 = vmatpush1.bf16.xpose.msra.mxu0 0
        %1555 = vmatprep.subr.bf16.mxu0 0
        %1556 = vmatpush1.bf16.xpose.msra.mxu0 0
        %1557 = vmatprep.subr.bf16.mxu0 0
        %1558 = vmatpush1.bf16.xpose.msra.mxu0 0
        %1559 = vmatprep.subr.bf16.mxu0 0
        %1560 = vmatpush1.bf16.xpose.msra.mxu0 0
        %1561 = vmatprep.subr.bf16.mxu0 0
        %1562 = vmatpush1.bf16.xpose.msra.mxu0 0
        %1563 = vmatprep.subr.bf16.mxu0 0
        %1564 = vmatpush1.bf16.xpose.msra.mxu0 0
        %1565 = vmatprep.mubr.bf16.mxu0 %v1442
        %1566 = vmatmul.mubr.bf16.gmra.mrb[0].mxu0 %v1441
        %v1567 = vpop.f32.mrb[0].mxu0
        %v1568 = vadd.f32 %v1452, %v1567
        %v1569 = vpop.f32.mrb[0].mxu0
        %v1570 = vpop.f32.mrb[0].mxu0
        %v1571 = vadd.f32 %v1452, %v1570
        %v1572 = vpop.f32.mrb[0].mxu0
        %1573 = vdwg.mxu0
        %1574 = vmatprep.subr.bf16.mxu0 %v1504
        %1575 = vmatpush1.bf16.xpose.msra.mxu0 %v1503
        %1576 = vmatprep.subr.bf16.mxu0 %v1512
        %1577 = vmatpush1.bf16.xpose.msra.mxu0 %v1511
        %1578 = vmatprep.subr.bf16.mxu0 0
        %1579 = vmatpush1.bf16.xpose.msra.mxu0 0
        %1580 = vmatprep.subr.bf16.mxu0 0
        %1581 = vmatpush1.bf16.xpose.msra.mxu0 0
        %1582 = vmatprep.subr.bf16.mxu0 0
        %1583 = vmatpush1.bf16.xpose.msra.mxu0 0
        %1584 = vmatprep.subr.bf16.mxu0 0
        %1585 = vmatpush1.bf16.xpose.msra.mxu0 0
        %1586 = vmatprep.subr.bf16.mxu0 0
        %1587 = vmatpush1.bf16.xpose.msra.mxu0 0
        %1588 = vmatprep.subr.bf16.mxu0 0
        %1589 = vmatpush1.bf16.xpose.msra.mxu0 0
        %1590 = vmatprep.subr.bf16.mxu0 0
        %1591 = vmatpush1.bf16.xpose.msra.mxu0 0
        %1592 = vmatprep.subr.bf16.mxu0 0
        %1593 = vmatpush1.bf16.xpose.msra.mxu0 0
        %1594 = vmatprep.subr.bf16.mxu0 0
        %1595 = vmatpush1.bf16.xpose.msra.mxu0 0
        %1596 = vmatprep.subr.bf16.mxu0 0
        %1597 = vmatpush1.bf16.xpose.msra.mxu0 0
        %1598 = vmatprep.subr.bf16.mxu0 0
        %1599 = vmatpush1.bf16.xpose.msra.mxu0 0
        %1600 = vmatprep.subr.bf16.mxu0 0
        %1601 = vmatpush1.bf16.xpose.msra.mxu0 0
        %1602 = vmatprep.subr.bf16.mxu0 0
        %1603 = vmatpush1.bf16.xpose.msra.mxu0 0
        %1604 = vmatprep.subr.bf16.mxu0 0
        %1605 = vmatpush1.bf16.xpose.msra.mxu0 0
        %1606 = vmatprep.mubr.bf16.mxu0 %v1444
        %1607 = vmatmul.mubr.bf16.gmra.mrb[0].mxu0 %v1443
        %v1608 = vpop.f32.mrb[0].mxu0
        %v1609 = vadd.f32 %v1568, %v1608
        %v1610 = vpop.f32.mrb[0].mxu0
        %v1611 = vpop.f32.mrb[0].mxu0
        %v1612 = vadd.f32 %v1571, %v1611
        %v1613 = vpop.f32.mrb[0].mxu0
        %1614 = vdwg.mxu0
        %1615 = vmatprep.subr.bf16.mxu0 %v1506
        %1616 = vmatpush1.bf16.xpose.msra.mxu0 %v1505
        %1617 = vmatprep.subr.bf16.mxu0 %v1514
        %1618 = vmatpush1.bf16.xpose.msra.mxu0 %v1513
        %1619 = vmatprep.subr.bf16.mxu0 0
        %1620 = vmatpush1.bf16.xpose.msra.mxu0 0
        %1621 = vmatprep.subr.bf16.mxu0 0
        %1622 = vmatpush1.bf16.xpose.msra.mxu0 0
        %1623 = vmatprep.subr.bf16.mxu0 0
        %1624 = vmatpush1.bf16.xpose.msra.mxu0 0
        %1625 = vmatprep.subr.bf16.mxu0 0
        %1626 = vmatpush1.bf16.xpose.msra.mxu0 0
        %1627 = vmatprep.subr.bf16.mxu0 0
        %1628 = vmatpush1.bf16.xpose.msra.mxu0 0
        %1629 = vmatprep.subr.bf16.mxu0 0
        %1630 = vmatpush1.bf16.xpose.msra.mxu0 0
        %1631 = vmatprep.subr.bf16.mxu0 0
        %1632 = vmatpush1.bf16.xpose.msra.mxu0 0
        %1633 = vmatprep.subr.bf16.mxu0 0
        %1634 = vmatpush1.bf16.xpose.msra.mxu0 0
        %1635 = vmatprep.subr.bf16.mxu0 0
        %1636 = vmatpush1.bf16.xpose.msra.mxu0 0
        %1637 = vmatprep.subr.bf16.mxu0 0
        %1638 = vmatpush1.bf16.xpose.msra.mxu0 0
        %1639 = vmatprep.subr.bf16.mxu0 0
        %1640 = vmatpush1.bf16.xpose.msra.mxu0 0
        %1641 = vmatprep.subr.bf16.mxu0 0
        %1642 = vmatpush1.bf16.xpose.msra.mxu0 0
        %1643 = vmatprep.subr.bf16.mxu0 0
        %1644 = vmatpush1.bf16.xpose.msra.mxu0 0
        %1645 = vmatprep.subr.bf16.mxu0 0
        %1646 = vmatpush1.bf16.xpose.msra.mxu0 0
        %1647 = vmatprep.mubr.bf16.mxu0 %v1446
        %1648 = vmatmul.mubr.bf16.gmra.mrb[0].mxu0 %v1445
        %v1649 = vpop.f32.mrb[0].mxu0
        %v1650 = vadd.f32 %v1609, %v1649
        %v1651 = vpop.f32.mrb[0].mxu0
        %v1652 = vpop.f32.mrb[0].mxu0
        %v1653 = vadd.f32 %v1612, %v1652
        %v1654 = vpop.f32.mrb[0].mxu0
        %1655 = vdwg.mxu0
        %1656 = vmatprep.subr.bf16.mxu0 %v1508
        %1657 = vmatpush1.bf16.xpose.msra.mxu0 %v1507
        %1658 = vmatprep.subr.bf16.mxu0 %v1516
        %1659 = vmatpush1.bf16.xpose.msra.mxu0 %v1515
        %1660 = vmatprep.subr.bf16.mxu0 0
        %1661 = vmatpush1.bf16.xpose.msra.mxu0 0
        %1662 = vmatprep.subr.bf16.mxu0 0
        %1663 = vmatpush1.bf16.xpose.msra.mxu0 0
        %1664 = vmatprep.subr.bf16.mxu0 0
        %1665 = vmatpush1.bf16.xpose.msra.mxu0 0
        %1666 = vmatprep.subr.bf16.mxu0 0
        %1667 = vmatpush1.bf16.xpose.msra.mxu0 0
        %1668 = vmatprep.subr.bf16.mxu0 0
        %1669 = vmatpush1.bf16.xpose.msra.mxu0 0
        %1670 = vmatprep.subr.bf16.mxu0 0
        %1671 = vmatpush1.bf16.xpose.msra.mxu0 0
        %1672 = vmatprep.subr.bf16.mxu0 0
        %1673 = vmatpush1.bf16.xpose.msra.mxu0 0
        %1674 = vmatprep.subr.bf16.mxu0 0
        %1675 = vmatpush1.bf16.xpose.msra.mxu0 0
        %1676 = vmatprep.subr.bf16.mxu0 0
        %1677 = vmatpush1.bf16.xpose.msra.mxu0 0
        %1678 = vmatprep.subr.bf16.mxu0 0
        %1679 = vmatpush1.bf16.xpose.msra.mxu0 0
        %1680 = vmatprep.subr.bf16.mxu0 0
        %1681 = vmatpush1.bf16.xpose.msra.mxu0 0
        %1682 = vmatprep.subr.bf16.mxu0 0
        %1683 = vmatpush1.bf16.xpose.msra.mxu0 0
        %1684 = vmatprep.subr.bf16.mxu0 0
        %1685 = vmatpush1.bf16.xpose.msra.mxu0 0
        %1686 = vmatprep.subr.bf16.mxu0 0
        %1687 = vmatpush1.bf16.xpose.msra.mxu0 0
        %1688 = vmatprep.mubr.bf16.mxu0 %v1448
        %1689 = vmatmul.mubr.bf16.gmra.mrb[0].mxu0 %v1447
        %v1690 = vpop.f32.mrb[0].mxu0
        %v1691 = vadd.f32 %v1650, %v1690
        %v1692 = vpop.f32.mrb[0].mxu0
        %v1693 = vpop.f32.mrb[0].mxu0
        %v1694 = vadd.f32 %v1653, %v1693
        %v1695 = vpop.f32.mrb[0].mxu0
        %1696 = vdwg.mxu0
        %v1697 = vadd.f32 %v1093, %v1691
        %v1698 = vadd.f32 %v1094, %v1694
        %v1699 = vsel %vm399, %v1697, 0.0
        %1700 = vadd.xlane.f32.xlu0 %v1699
        %v1701 = vpop.xlane.xlu0 %1700
        %v1702 = vsel %vm399, %v1698, 0.0
        %1703 = vadd.xlane.f32.xlu0 %v1702
        %v1704 = vpop.xlane.xlu0 %1703
        %v1705 = vrcp.pop 32.0
        %v1706 = vmul.f32 %v1701, %v1705
        %v1707 = vmul.f32 %v1704, %v1705
        %v1708 = vsub.f32 %v1697, %v1706
        %v1709 = vsub.f32 %v1698, %v1707
        %v1710 = vmul.f32 %v1708, %v1708
        %v1711 = vmul.f32 %v1709, %v1709
        %v1712 = vsel %vm399, %v1710, 0.0
        %1713 = vadd.xlane.f32.xlu0 %v1712
        %v1714 = vpop.xlane.xlu0 %1713
        %v1715 = vsel %vm399, %v1711, 0.0
        %1716 = vadd.xlane.f32.xlu0 %v1715
        %v1717 = vpop.xlane.xlu0 %1716
        %v1718 = vmul.f32 %v1714, %v1705
        %v1719 = vmul.f32 %v1717, %v1705
        %v1720 = vadd.f32 %v1718, 1e-05
        %v1721 = vadd.f32 %v1719, 1e-05
        %v1722 = vrsqrt.pop %v1720
        %v1723 = vrsqrt.pop %v1721
        %v1724 = vmul.f32 %v1708, %v1722
        %v1725 = vmul.f32 %v1709, %v1723
        %v1726 = vlaneseq
        %v1727 = vshrl.u32 %v1726, 7
        %v1728 = vsub.s32 0, %v1727
        %v1729 = vrot.slane %v356, %v1728
        %v1730 = vmul.f32 %v1724, %v1729
        %v1731 = vmul.f32 %v1725, %v1729
        %v1732 = vlaneseq
        %v1733 = vshrl.u32 %v1732, 7
        %v1734 = vsub.s32 0, %v1733
        %v1735 = vrot.slane %v357, %v1734
        %v1736 = vadd.f32 %v1730, %v1735
        %v1737 = vadd.f32 %v1731, %v1735
        %v1738 = vmax.f32 %v1736, 0.0
        %v1739 = vmax.f32 %v1737, 0.0
        %1740 = vst.msk [vmem:[%s339] sm:$0xff] %vm399, %v1738
        %1741 = vst.msk [vmem:[%s339 + $0x8] sm:$0xff] %vm399, %v1739
        %s1742 = sand.u32 %s171, 1
        %s1743 = scalar_lea.sflag [#allocation4], %s1742
        %s1744 = sand.u32 %s171, 1
        %s1745 = smul.addr %s1744, 16
        %s1746 = scalar_lea.vmem [#allocation8], %s1745
        %s1747 = sand.u32 %s197, 1
        %s1748 = scalar_lea.sflag [#allocation10], %s1747
        %s1749 = sand.u32 %s197, 1
        %s1750 = smul.addr %s1749, 16
        %s1751 = scalar_lea.vmem [#allocation9], %s1750
        // Predicated region
        $region57: #{lv_attention_vkv_forward.1} parent=43 // pred_check
          %p1752 = pneg %p181
        $region58: #{lv_attention_vkv_forward.1} parent=43 // pred_check_branch
          %1754 = sbr.rel (%p1752) target = $region60
        $region59: #{lv_attention_vkv_forward.1} parent=43 // pred_region
          %s1756 = ssub.s32 256, 256
          %1757 = vsyncadd %s1743, %s1756
          %s1758 = smul.addr %s27, 2
          %s1759 = smul.addr %s1758, 128
          %s1760 = scalar_lea.hbm %s6, %s1759
          %s1761 = sshll.u32 %s1746, 4
          %s1762 = int_to_ptr.vmem [resolvable:$true] %s1761
          %1767 = dma.vmem_to_hbm [thread:$0]  %s1762, 256, %s1760, %s1743, 128, 128, 8
        $region60: #{lv_attention_vkv_forward.1} parent=43 // pred_fallthru
          _
        // Predicated region
        $region61: #{lv_attention_vkv_forward.1} parent=43 // pred_check
          %p1768 = pneg %p207
        $region62: #{lv_attention_vkv_forward.1} parent=43 // pred_check_branch
          %1770 = sbr.rel (%p1768) target = $region64
        $region63: #{lv_attention_vkv_forward.1} parent=43 // pred_region
          %s1772 = ssub.s32 256, 256
          %1773 = vsyncadd %s1748, %s1772
          %s1774 = smul.addr %s27, 2
          %s1775 = smul.addr %s1774, 128
          %s1776 = scalar_lea.hbm %s7, %s1775
          %s1777 = sshll.u32 %s1751, 4
          %s1778 = int_to_ptr.vmem [resolvable:$true] %s1777
          %1783 = dma.vmem_to_hbm [thread:$0]  %s1778, 256, %s1776, %s1748, 128, 128, 8
        $region64: #{lv_attention_vkv_forward.1} parent=43 // pred_fallthru
          _
      $region44: #{lv_attention_vkv_forward.1} parent=5 // pred_fallthru
        _
      %p1784 = scmp.le.s32.totalorder 2, %s22
      // Predicated region
      $region65: #{lv_attention_vkv_forward.1} parent=5 // pred_check
        %p1785 = pneg %p1784
      $region66: #{lv_attention_vkv_forward.1} parent=5 // pred_check_branch
        %1787 = sbr.rel (%p1785) target = $region68
      $region67: #{lv_attention_vkv_forward.1} parent=5 // pred_region
        %s1788 = ssub.s32 %s22, 2
        // Predicated region
        $region69: #{lv_attention_vkv_forward.1} parent=67 // pred_check
          %p1789 = pneg %p187
        $region70: #{lv_attention_vkv_forward.1} parent=67 // pred_check_branch
          %1791 = sbr.rel (%p1789) target = $region72
        $region71: #{lv_attention_vkv_forward.1} parent=67 // pred_region
          %s1792 = sand.u32 %s172, 1
          %s1793 = scalar_lea.sflag [#allocation4], %s1792
          %s1794 = sand.u32 %s172, 1
          %s1795 = smul.addr %s1794, 16
          %s1796 = scalar_lea.vmem [#allocation8], %s1795
          %1797 = dma.done %s1793, 256
        $region72: #{lv_attention_vkv_forward.1} parent=67 // pred_fallthru
          _
        // Predicated region
        $region73: #{lv_attention_vkv_forward.1} parent=67 // pred_check
          %p1798 = pneg %p213
        $region74: #{lv_attention_vkv_forward.1} parent=67 // pred_check_branch
          %1800 = sbr.rel (%p1798) target = $region76
        $region75: #{lv_attention_vkv_forward.1} parent=67 // pred_region
          %s1801 = sand.u32 %s198, 1
          %s1802 = scalar_lea.sflag [#allocation10], %s1801
          %s1803 = sand.u32 %s198, 1
          %s1804 = smul.addr %s1803, 16
          %s1805 = scalar_lea.vmem [#allocation9], %s1804
          %1806 = dma.done %s1802, 256
        $region76: #{lv_attention_vkv_forward.1} parent=67 // pred_fallthru
          _
      $region68: #{lv_attention_vkv_forward.1} parent=5 // pred_fallthru
        _
    $region6: #{lv_attention_vkv_forward.1} parent=1 // loop_footer
      %s26 = sadd.s32 1, %s22
    $region7: #{lv_attention_vkv_forward.1} parent=1 // loop_footer_branch
      %21 = sbr.rel target = $region3
    $region8: #{lv_attention_vkv_forward.1} parent=1 // loop_exit
      _
    %1807 = vsyncpa [#allocation3], 1
    %s1808 = scalar_lea.sflag [#allocation3], 1
    %1809 = vsyncpa %s1808, 1
    %1810 = vsyncpa [#allocation6], 1
    %1811 = vsyncpa [#allocation4], 1
    %s1812 = scalar_lea.sflag [#allocation4], 1
    %1813 = vsyncpa %s1812, 1
    %1814 = vsyncpa [#allocation10], 1
    %s1815 = scalar_lea.sflag [#allocation10], 1
    %1816 = vsyncpa %s1815, 1

</llo_original>
